<compile_context>
chip_gen: v6e
topology: v6e:2x2x1
jax: 0.10.0
libtpu: 0.0.40
codegen_flags: <defaults>
</compile_context>

<pallas_src>
import functools

import jax
import jax.numpy as jnp
from jax.experimental import pallas as pl
from jax.experimental.pallas import tpu as pltpu


def _slot_attention_kernel(s_ref, d_ref, wq_ref, bq_ref, wkv_ref, bkv_ref, o_ref, *,
                           batch, ts, td, heads_per_group, head_dim):
    """One head-group of SlotAttention over the whole (folded) batch.

    s_ref   : (b*ts, hc)        slot tokens, batch folded into rows
    d_ref   : (b*td, hc)        data tokens, batch folded into rows
    wq_ref  : (1, hc, gw)       pre-transposed Q weight columns for this group
    bq_ref  : (1, 1, gw)
    wkv_ref : (1, hc, 2*gw)     pre-transposed [K | V] weight columns for this group
    bkv_ref : (1, 1, 2*gw)
    o_ref   : (1, b, ts, gw)    output channels for this head group
    """
    c = head_dim
    scale = 1.0 / float(c) ** 0.5
    gw = heads_per_group * c

    s2 = s_ref[...]                                   # (b*ts, hc)
    d2 = d_ref[...]                                   # (b*td, hc)

    # Fused projections (single MXU dot each; weights already in x @ W layout).
    q2 = jnp.dot(s2, wq_ref[0], preferred_element_type=jnp.float32) + bq_ref[0]    # (b*ts, gw)
    kv2 = jnp.dot(d2, wkv_ref[0], preferred_element_type=jnp.float32) + bkv_ref[0]  # (b*td, 2*gw)
    k2 = kv2[:, :gw]                                  # (b*td, gw)
    v2 = kv2[:, gw:]                                  # (b*td, gw)

    outs = []
    for hh in range(heads_per_group):                 # short static loop (2 iters)
        sl = slice(hh * c, (hh + 1) * c)
        qh = q2[:, sl].reshape(batch, ts, c)          # (b, ts, c)
        kh = k2[:, sl].reshape(batch, td, c)          # (b, td, c)
        vh = v2[:, sl].reshape(batch, td, c)          # (b, td, c)

        # scores a[b, s, d] = <q_s, k_d> / sqrt(c), batched over b on the MXU
        sc = jnp.einsum('bsc,bdc->bsd', qh, kh,
                        preferred_element_type=jnp.float32) * scale   # (b, ts, td)

        # softmax over the slot/query axis s  (torch.softmax(..., dim=0))
        sc = sc - jnp.max(sc, axis=1, keepdims=True)
        e = jnp.exp(sc)
        a = e * pl.reciprocal(jnp.sum(e, axis=1, keepdims=True), approx=True)
        # TODO(synk): attention_dropout omitted (eval-mode forward; dropout = identity)

        n = jnp.sum(a, axis=2, keepdims=True) + 0.001                 # (b, ts, 1)
        oh = jnp.einsum('bsd,bdc->bsc', a, vh,
                        preferred_element_type=jnp.float32) / n       # (b, ts, c)
        outs.append(oh)

    o_ref[0] = jnp.concatenate(outs, axis=-1)                          # (b, ts, gw)
    # TODO(synk): residual_dropout omitted (eval-mode forward; dropout = identity)


def slot_attention(s, d, params, n_heads):
    """s: (ts, b, hc), d: (td, b, hc); params = (wq, bq, wk, bk, wv, bv) in
    PyTorch Linear layout (weight (hc, hc), bias (hc,)).  Returns (ts, b, hc)."""
    ts, b, hc = s.shape
    td = d.shape[0]
    c = hc // n_heads

    # Split the heads into groups that become parallel grid steps (>=2 on v7x).
    n_groups = 2 if (n_heads % 2 == 0) else 1
    hpg = n_heads // n_groups
    gw = hpg * c                                       # channel width of one group

    wq, bq, wk, bk, wv, bv = params
    wq_t, wk_t, wv_t = wq.T, wk.T, wv.T                # x @ W layout (hc, hc)

    # Per-group weight slabs; K and V columns are concatenated so the kernel does
    # a single fused K/V projection dot per group.
    wq_g = jnp.stack([wq_t[:, g * gw:(g + 1) * gw] for g in range(n_groups)])          # (G, hc, gw)
    bq_g = jnp.stack([bq[g * gw:(g + 1) * gw].reshape(1, gw) for g in range(n_groups)])  # (G, 1, gw)
    wkv_g = jnp.stack([jnp.concatenate([wk_t[:, g * gw:(g + 1) * gw],
                                        wv_t[:, g * gw:(g + 1) * gw]], axis=1)
                       for g in range(n_groups)])                                       # (G, hc, 2gw)
    bkv_g = jnp.stack([jnp.concatenate([bk[g * gw:(g + 1) * gw],
                                        bv[g * gw:(g + 1) * gw]]).reshape(1, 2 * gw)
                       for g in range(n_groups)])                                       # (G, 1, 2gw)

    # Fold batch into the matmul M dimension (layout plumbing outside the kernel).
    s2 = jnp.transpose(s, (1, 0, 2)).reshape(b * ts, hc)
    d2 = jnp.transpose(d, (1, 0, 2)).reshape(b * td, hc)

    kernel = functools.partial(_slot_attention_kernel, batch=b, ts=ts, td=td,
                               heads_per_group=hpg, head_dim=c)

    out = pl.pallas_call(
        kernel,
        out_shape=jax.ShapeDtypeStruct((n_groups, b, ts, gw), jnp.float32),
        grid_spec=pltpu.PrefetchScalarGridSpec(
            num_scalar_prefetch=0,
            grid=(n_groups,),
            in_specs=[
                pl.BlockSpec((b * ts, hc), lambda g: (0, 0)),          # s2 (full)
                pl.BlockSpec((b * td, hc), lambda g: (0, 0)),          # d2 (full)
                pl.BlockSpec((1, hc, gw), lambda g: (g, 0, 0)),        # wq group
                pl.BlockSpec((1, 1, gw), lambda g: (g, 0, 0)),         # bq group
                pl.BlockSpec((1, hc, 2 * gw), lambda g: (g, 0, 0)),    # wkv group
                pl.BlockSpec((1, 1, 2 * gw), lambda g: (g, 0, 0)),     # bkv group
            ],
            out_specs=pl.BlockSpec((1, b, ts, gw), lambda g: (g, 0, 0, 0)),
        ),
        compiler_params=pltpu.CompilerParams(dimension_semantics=("parallel",)),
    )(s2, d2, wq_g, bq_g, wkv_g, bkv_g)

    # (G, b, ts, gw) -> (b, ts, hc): group g owns channels [g*gw : (g+1)*gw].
    out = jnp.transpose(out, (1, 2, 0, 3)).reshape(b, ts, hc)
    return jnp.transpose(out, (1, 0, 2))               # back to (ts, b, hc)


def _reference_slot_attention(s, d, params, n_heads):
    """Pure-JAX replica of the PyTorch SlotAttention.forward (eval mode)."""
    wq, bq, wk, bk, wv, bv = params
    ts, b, hc = s.shape
    td = d.shape[0]
    c = hc // n_heads
    q = (s @ wq.T + bq).reshape(ts, b, n_heads, c)
    k = (d @ wk.T + bk).reshape(td, b, n_heads, c)
    v = (d @ wv.T + bv).reshape(1, td, b, n_heads, c)
    a = jnp.einsum('sbhc,dbhc->sdbh', q, k) / jnp.sqrt(jnp.float32(c))
    a = jax.nn.softmax(a, axis=0)[..., None]           # (ts, td, b, h, 1)
    n = jnp.sum(a, axis=1) + 0.001                     # (ts, b, h, 1)
    out = jnp.sum(a * v, axis=1) / n                   # (ts, b, h, c)
    return out.reshape(ts, b, hc)


if __name__ == "__main__":
    # Small shapes consistent with the module: slots=8, data tokens=16, batch=2,
    # channels=32, heads=4 (head_dim=8).
    TS, TD, B, HC, H = 8, 16, 2, 32, 4

    key = jax.random.PRNGKey(0)
    keys = jax.random.split(key, 8)

    wq = jax.random.normal(keys[0], (HC, HC), jnp.float32) * 0.05
    wk = jax.random.normal(keys[1], (HC, HC), jnp.float32) * 0.05
    wv = jax.random.normal(keys[2], (HC, HC), jnp.float32) * 0.05
    bq = jax.random.normal(keys[3], (HC,), jnp.float32) * 0.01
    bk = jax.random.normal(keys[4], (HC,), jnp.float32) * 0.01
    bv = jax.random.normal(keys[5], (HC,), jnp.float32) * 0.01
    params = (wq, bq, wk, bk, wv, bv)

    s = jax.random.normal(keys[6], (TS, B, HC), jnp.float32)   # slots
    d = jax.random.normal(keys[7], (TD, B, HC), jnp.float32)   # data tokens

    out = slot_attention(s, d, params, H)
    out = jax.block_until_ready(out)

    ref = _reference_slot_attention(s, d, params, H)
    assert out.shape == (TS, B, HC)
    max_err = float(jnp.max(jnp.abs(out - ref)))
    assert jnp.allclose(out, ref, atol=2e-3, rtol=2e-3), max_err

    print("KERNEL_OK")
</pallas_src>

<mosaic_0001>
module attributes {stable_mosaic.version = 11 : i64} {
  func.func @_slot_attention_kernel(%arg0: i32, %arg1: memref<16x32xf32, #tpu.memory_space<vmem>>, %arg2: memref<32x32xf32, #tpu.memory_space<vmem>>, %arg3: memref<1x32x16xf32, #tpu.memory_space<vmem>>, %arg4: memref<1x1x16xf32, #tpu.memory_space<vmem>>, %arg5: memref<1x32x32xf32, #tpu.memory_space<vmem>>, %arg6: memref<1x1x32xf32, #tpu.memory_space<vmem>>, %arg7: memref<1x2x8x16xf32, #tpu.memory_space<vmem>>) attributes {dimension_semantics = [#tpu.dimension_semantics<parallel>], iteration_bounds = array<i64: 2>, scalar_prefetch = 0 : i64, scratch_operands = 0 : i64, tpu.core_type = #tpu.core_type<tc>, window_params = [{pipeline_mode = #tpu.pipeline_mode<synchronous>, transform_indices = @transform_0, window_bounds = array<i64: 16, 32>}, {pipeline_mode = #tpu.pipeline_mode<synchronous>, transform_indices = @transform_1, window_bounds = array<i64: 32, 32>}, {transform_indices = @transform_2, window_bounds = array<i64: 1, 32, 16>}, {transform_indices = @transform_3, window_bounds = array<i64: 1, 1, 16>}, {transform_indices = @transform_4, window_bounds = array<i64: 1, 32, 32>}, {transform_indices = @transform_5, window_bounds = array<i64: 1, 1, 32>}, {transform_indices = @transform_6, window_bounds = array<i64: 1, 2, 8, 16>}]} {
    %c0 = arith.constant 0 : index
    %c0_0 = arith.constant 0 : index
    %0 = vector.load %arg1[%c0, %c0_0] : memref<16x32xf32, #tpu.memory_space<vmem>>, vector<16x32xf32>
    %c0_1 = arith.constant 0 : index
    %c0_2 = arith.constant 0 : index
    %1 = vector.load %arg2[%c0_1, %c0_2] : memref<32x32xf32, #tpu.memory_space<vmem>>, vector<32x32xf32>
    %c0_3 = arith.constant 0 : index
    %c0_4 = arith.constant 0 : index
    %c0_5 = arith.constant 0 : index
    %2 = vector.load %arg3[%c0_3, %c0_4, %c0_5] : memref<1x32x16xf32, #tpu.memory_space<vmem>>, vector<1x32x16xf32>
    %3 = vector.shape_cast %2 : vector<1x32x16xf32> to vector<32x16xf32>
    %cst = arith.constant dense<0.000000e+00> : vector<16x16xf32>
    %4 = tpu.matmul %0, %3, %cst {dimension_numbers = #tpu.dot_dimension_numbers<[1], [0], [0], [1], [0, 0, 1, 1], [], []>} : vector<16x32xf32>, vector<32x16xf32>, vector<16x16xf32> -> vector<16x16xf32>
    %c0_6 = arith.constant 0 : index
    %c0_7 = arith.constant 0 : index
    %c0_8 = arith.constant 0 : index
    %5 = vector.load %arg4[%c0_6, %c0_7, %c0_8] : memref<1x1x16xf32, #tpu.memory_space<vmem>>, vector<1x1x16xf32>
    %6 = vector.shape_cast %5 : vector<1x1x16xf32> to vector<1x16xf32>
    %7 = vector.broadcast %6 : vector<1x16xf32> to vector<16x16xf32>
    %8 = arith.addf %4, %7 : vector<16x16xf32>
    %c0_9 = arith.constant 0 : index
    %c0_10 = arith.constant 0 : index
    %c0_11 = arith.constant 0 : index
    %9 = vector.load %arg5[%c0_9, %c0_10, %c0_11] : memref<1x32x32xf32, #tpu.memory_space<vmem>>, vector<1x32x32xf32>
    %10 = vector.shape_cast %9 : vector<1x32x32xf32> to vector<32x32xf32>
    %cst_12 = arith.constant dense<0.000000e+00> : vector<32x32xf32>
    %11 = tpu.matmul %1, %10, %cst_12 {dimension_numbers = #tpu.dot_dimension_numbers<[1], [0], [0], [1], [0, 0, 1, 1], [], []>} : vector<32x32xf32>, vector<32x32xf32>, vector<32x32xf32> -> vector<32x32xf32>
    %c0_13 = arith.constant 0 : index
    %c0_14 = arith.constant 0 : index
    %c0_15 = arith.constant 0 : index
    %12 = vector.load %arg6[%c0_13, %c0_14, %c0_15] : memref<1x1x32xf32, #tpu.memory_space<vmem>>, vector<1x1x32xf32>
    %13 = vector.shape_cast %12 : vector<1x1x32xf32> to vector<1x32xf32>
    %14 = vector.broadcast %13 : vector<1x32xf32> to vector<32x32xf32>
    %15 = arith.addf %11, %14 : vector<32x32xf32>
    %16 = vector.extract_strided_slice %15 {offsets = [0, 0], sizes = [32, 16], strides = [1, 1]} : vector<32x32xf32> to vector<32x16xf32>
    %17 = vector.extract_strided_slice %15 {offsets = [0, 16], sizes = [32, 16], strides = [1, 1]} : vector<32x32xf32> to vector<32x16xf32>
    %18 = vector.extract_strided_slice %8 {offsets = [0, 0], sizes = [16, 8], strides = [1, 1]} : vector<16x16xf32> to vector<16x8xf32>
    %19 = vector.shape_cast %18 : vector<16x8xf32> to vector<2x8x8xf32>
    %20 = vector.extract_strided_slice %16 {offsets = [0, 0], sizes = [32, 8], strides = [1, 1]} : vector<32x16xf32> to vector<32x8xf32>
    %21 = vector.shape_cast %20 : vector<32x8xf32> to vector<2x16x8xf32>
    %22 = vector.extract_strided_slice %17 {offsets = [0, 0], sizes = [32, 8], strides = [1, 1]} : vector<32x16xf32> to vector<32x8xf32>
    %23 = vector.shape_cast %22 : vector<32x8xf32> to vector<2x16x8xf32>
    "tpu.trace_start"() <{level = 10 : i32, message = "bsc,bdc->bsd"}> : () -> ()
    %cst_16 = arith.constant dense<0.000000e+00> : vector<2x8x16xf32>
    %24 = tpu.matmul %19, %21, %cst_16 {dimension_numbers = #tpu.dot_dimension_numbers<[2], [2], [1], [1], [0, 0, 0, 1, 1, 1], [0], [0]>} : vector<2x8x8xf32>, vector<2x16x8xf32>, vector<2x8x16xf32> -> vector<2x8x16xf32>
    "tpu.trace_stop"() : () -> ()
    %cst_17 = arith.constant 0.353553385 : f32
    %25 = vector.broadcast %cst_17 : f32 to vector<2x8x16xf32>
    %26 = arith.mulf %24, %25 : vector<2x8x16xf32>
    %cst_18 = arith.constant dense<0xFF800000> : vector<2x16xf32>
    %27 = vector.multi_reduction <maximumf>, %26, %cst_18 [1] : vector<2x8x16xf32> to vector<2x16xf32>
    %28 = vector.shape_cast %27 : vector<2x16xf32> to vector<2x1x16xf32>
    %29 = vector.broadcast %28 : vector<2x1x16xf32> to vector<2x8x16xf32>
    %30 = arith.subf %26, %29 : vector<2x8x16xf32>
    %31 = math.exp %30 : vector<2x8x16xf32>
    %cst_19 = arith.constant dense<0.000000e+00> : vector<2x16xf32>
    %32 = vector.multi_reduction <add>, %31, %cst_19 [1] : vector<2x8x16xf32> to vector<2x16xf32>
    %33 = vector.shape_cast %32 : vector<2x16xf32> to vector<2x1x16xf32>
    %34 = tpu.reciprocal %33 {approx = true} : vector<2x1x16xf32> -> vector<2x1x16xf32>
    %35 = vector.broadcast %34 : vector<2x1x16xf32> to vector<2x8x16xf32>
    %36 = arith.mulf %31, %35 : vector<2x8x16xf32>
    %cst_20 = arith.constant dense<0.000000e+00> : vector<2x8xf32>
    %37 = vector.multi_reduction <add>, %36, %cst_20 [2] : vector<2x8x16xf32> to vector<2x8xf32>
    %38 = vector.shape_cast %37 : vector<2x8xf32> to vector<2x8x1xf32>
    %cst_21 = arith.constant 1.000000e-03 : f32
    %39 = vector.broadcast %cst_21 : f32 to vector<2x8x1xf32>
    %40 = arith.addf %38, %39 : vector<2x8x1xf32>
    "tpu.trace_start"() <{level = 10 : i32, message = "bsd,bdc->bsc"}> : () -> ()
    %cst_22 = arith.constant dense<0.000000e+00> : vector<2x8x8xf32>
    %41 = tpu.matmul %36, %23, %cst_22 {dimension_numbers = #tpu.dot_dimension_numbers<[2], [1], [1], [2], [0, 0, 0, 1, 1, 2], [0], [0]>} : vector<2x8x16xf32>, vector<2x16x8xf32>, vector<2x8x8xf32> -> vector<2x8x8xf32>
    "tpu.trace_stop"() : () -> ()
    %42 = vector.broadcast %40 : vector<2x8x1xf32> to vector<2x8x8xf32>
    %43 = arith.divf %41, %42 : vector<2x8x8xf32>
    %44 = vector.extract_strided_slice %8 {offsets = [0, 8], sizes = [16, 8], strides = [1, 1]} : vector<16x16xf32> to vector<16x8xf32>
    %45 = vector.shape_cast %44 : vector<16x8xf32> to vector<2x8x8xf32>
    %46 = vector.extract_strided_slice %16 {offsets = [0, 8], sizes = [32, 8], strides = [1, 1]} : vector<32x16xf32> to vector<32x8xf32>
    %47 = vector.shape_cast %46 : vector<32x8xf32> to vector<2x16x8xf32>
    %48 = vector.extract_strided_slice %17 {offsets = [0, 8], sizes = [32, 8], strides = [1, 1]} : vector<32x16xf32> to vector<32x8xf32>
    %49 = vector.shape_cast %48 : vector<32x8xf32> to vector<2x16x8xf32>
    "tpu.trace_start"() <{level = 10 : i32, message = "bsc,bdc->bsd"}> : () -> ()
    %cst_23 = arith.constant dense<0.000000e+00> : vector<2x8x16xf32>
    %50 = tpu.matmul %45, %47, %cst_23 {dimension_numbers = #tpu.dot_dimension_numbers<[2], [2], [1], [1], [0, 0, 0, 1, 1, 1], [0], [0]>} : vector<2x8x8xf32>, vector<2x16x8xf32>, vector<2x8x16xf32> -> vector<2x8x16xf32>
    "tpu.trace_stop"() : () -> ()
    %cst_24 = arith.constant 0.353553385 : f32
    %51 = vector.broadcast %cst_24 : f32 to vector<2x8x16xf32>
    %52 = arith.mulf %50, %51 : vector<2x8x16xf32>
    %cst_25 = arith.constant dense<0xFF800000> : vector<2x16xf32>
    %53 = vector.multi_reduction <maximumf>, %52, %cst_25 [1] : vector<2x8x16xf32> to vector<2x16xf32>
    %54 = vector.shape_cast %53 : vector<2x16xf32> to vector<2x1x16xf32>
    %55 = vector.broadcast %54 : vector<2x1x16xf32> to vector<2x8x16xf32>
    %56 = arith.subf %52, %55 : vector<2x8x16xf32>
    %57 = math.exp %56 : vector<2x8x16xf32>
    %cst_26 = arith.constant dense<0.000000e+00> : vector<2x16xf32>
    %58 = vector.multi_reduction <add>, %57, %cst_26 [1] : vector<2x8x16xf32> to vector<2x16xf32>
    %59 = vector.shape_cast %58 : vector<2x16xf32> to vector<2x1x16xf32>
    %60 = tpu.reciprocal %59 {approx = true} : vector<2x1x16xf32> -> vector<2x1x16xf32>
    %61 = vector.broadcast %60 : vector<2x1x16xf32> to vector<2x8x16xf32>
    %62 = arith.mulf %57, %61 : vector<2x8x16xf32>
    %cst_27 = arith.constant dense<0.000000e+00> : vector<2x8xf32>
    %63 = vector.multi_reduction <add>, %62, %cst_27 [2] : vector<2x8x16xf32> to vector<2x8xf32>
    %64 = vector.shape_cast %63 : vector<2x8xf32> to vector<2x8x1xf32>
    %cst_28 = arith.constant 1.000000e-03 : f32
    %65 = vector.broadcast %cst_28 : f32 to vector<2x8x1xf32>
    %66 = arith.addf %64, %65 : vector<2x8x1xf32>
    "tpu.trace_start"() <{level = 10 : i32, message = "bsd,bdc->bsc"}> : () -> ()
    %cst_29 = arith.constant dense<0.000000e+00> : vector<2x8x8xf32>
    %67 = tpu.matmul %62, %49, %cst_29 {dimension_numbers = #tpu.dot_dimension_numbers<[2], [1], [1], [2], [0, 0, 0, 1, 1, 2], [0], [0]>} : vector<2x8x16xf32>, vector<2x16x8xf32>, vector<2x8x8xf32> -> vector<2x8x8xf32>
    "tpu.trace_stop"() : () -> ()
    %68 = vector.broadcast %66 : vector<2x8x1xf32> to vector<2x8x8xf32>
    %69 = arith.divf %67, %68 : vector<2x8x8xf32>
    %70 = tpu.concatenate %43, %69 in 2 : vector<2x8x8xf32>, vector<2x8x8xf32> -> vector<2x8x16xf32>
    %c0_30 = arith.constant 0 : index
    %c0_31 = arith.constant 0 : index
    %c0_32 = arith.constant 0 : index
    %c0_33 = arith.constant 0 : index
    %71 = vector.load %arg7[%c0_30, %c0_31, %c0_32, %c0_33] : memref<1x2x8x16xf32, #tpu.memory_space<vmem>>, vector<1x2x8x16xf32>
    %72 = vector.shape_cast %71 : vector<1x2x8x16xf32> to vector<2x8x16xf32>
    %73 = vector.shape_cast %70 : vector<2x8x16xf32> to vector<1x2x8x16xf32>
    tpu.vector_store %arg7[%c0_30, %c0_31, %c0_32, %c0_33], %73 {strides = array<i32>} : memref<1x2x8x16xf32, #tpu.memory_space<vmem>>, vector<1x2x8x16xf32>,
    return
  }
  func.func @transform_0(%arg0: i32) -> (i32, i32) {
    %c0_i32 = arith.constant 0 : i32
    %c0_i32_0 = arith.constant 0 : i32
    %c0_i32_1 = arith.constant 0 : i32
    return %c0_i32, %c0_i32_0 : i32, i32
  }
  func.func @transform_1(%arg0: i32) -> (i32, i32) {
    %c0_i32 = arith.constant 0 : i32
    %c0_i32_0 = arith.constant 0 : i32
    %c0_i32_1 = arith.constant 0 : i32
    return %c0_i32, %c0_i32_0 : i32, i32
  }
  func.func @transform_2(%arg0: i32) -> (i32, i32, i32) {
    %c0_i32 = arith.constant 0 : i32
    %c0_i32_0 = arith.constant 0 : i32
    %c0_i32_1 = arith.constant 0 : i32
    return %arg0, %c0_i32, %c0_i32_0 : i32, i32, i32
  }
  func.func @transform_3(%arg0: i32) -> (i32, i32, i32) {
    %c0_i32 = arith.constant 0 : i32
    %c0_i32_0 = arith.constant 0 : i32
    %c0_i32_1 = arith.constant 0 : i32
    return %arg0, %c0_i32, %c0_i32_0 : i32, i32, i32
  }
  func.func @transform_4(%arg0: i32) -> (i32, i32, i32) {
    %c0_i32 = arith.constant 0 : i32
    %c0_i32_0 = arith.constant 0 : i32
    %c0_i32_1 = arith.constant 0 : i32
    return %arg0, %c0_i32, %c0_i32_0 : i32, i32, i32
  }
  func.func @transform_5(%arg0: i32) -> (i32, i32, i32) {
    %c0_i32 = arith.constant 0 : i32
    %c0_i32_0 = arith.constant 0 : i32
    %c0_i32_1 = arith.constant 0 : i32
    return %arg0, %c0_i32, %c0_i32_0 : i32, i32, i32
  }
  func.func @transform_6(%arg0: i32) -> (i32, i32, i32, i32) {
    %c0_i32 = arith.constant 0 : i32
    %c0_i32_0 = arith.constant 0 : i32
    %c0_i32_1 = arith.constant 0 : i32
    %c0_i32_2 = arith.constant 0 : i32
    return %arg0, %c0_i32, %c0_i32_0, %c0_i32_1 : i32, i32, i32, i32
  }
}

</mosaic_0001>

<llo_original>
// kernel: tpu_custom_call.1
$region0: #{tpu_custom_call.1}
  #allocation0 [shape = 'u32[]', space=smem, size = 0x4, offset = 0x4, fixed_abs, tag = 'smem constant byte address 0x4 - core index']
  #allocation1 [shape = 'u32[144,128]{1,0:T(1,128)}', space=vmem, size = 0x12000, scoped, tag = 'internal scratch']
  %s0 = inlined_call_operand.hbm [shape: f32[16,32], index: 0, kind: input, shape index: {}]
  %s1 = inlined_call_operand.vmem [shape: f32[32,32], index: 1, kind: input, shape index: {}]
  %s2 = inlined_call_operand.vmem [shape: f32[2,32,16], index: 2, kind: input, shape index: {}]
  %s3 = inlined_call_operand.vmem [shape: f32[2,1,16], index: 3, kind: input, shape index: {}]
  %s4 = inlined_call_operand.vmem [shape: f32[2,32,32], index: 4, kind: input, shape index: {}]
  %s5 = inlined_call_operand.vmem [shape: f32[2,1,32], index: 5, kind: input, shape index: {}]
  %s6 = inlined_call_operand.hbm [shape: f32[2,2,8,16], index: 6, kind: output, shape index: {}]
  %s7 = sld [smem:[#allocation0]]
  $region61: #{tpu_custom_call.1} parent=0
    _
  %s9 = ssub.s32 1, %s7
  %s10 = scalar_select 0, %s9, %s7
  $region1: #{tpu_custom_call.1} parent=0
    #allocation2 [shape = 'u8[8192]{0}', space=vmem, size = 0x2000, scoped, tag = 'input window, operand 0, single buffered']
    #allocation3 [shape = 's32[2]{0}', space=sflag, size = 0x8, scoped, tag = 'scoped memory for tpu_custom_call.1']
    #allocation4 [shape = 's32[2]{0}', space=sflag, size = 0x8, scoped, tag = 'scoped memory for tpu_custom_call.1']
    #allocation5 [shape = 'u8[16384]{0}', space=vmem, size = 0x4000, scoped, tag = 'output window, operand 0']
    %11 = vsyncpa [#allocation3], 0
    %12 = vsyncpa [#allocation4], 0
    %s13 = scalar_lea.sflag [#allocation4], 1
    %14 = vsyncpa %s13, 0
    loop: start=0, step=1, limit=4
    $region2: #{tpu_custom_call.1} parent=1 // loop_pre_header
      _
    $region3: #{tpu_custom_call.1} parent=1 // loop_header
      %s16 = sphi 0, %s20
      %p17 = scmp.ge.s32.totalorder %s16, 4
      %s24 = sphi 0, %s24
      %s26 = sphi 0, %s24
      %s27 = sphi 0, %s26
      %s41 = sphi 0, %s27
      %s45 = sphi 0, %s45
      %s47 = sphi 0, %s45
      %s48 = sphi 0, %s47
      %s62 = sphi 0, %s48
      %s68 = sphi 0, %s70
      %s71 = sphi 0, %s68
      %s72 = sphi 0, %s71
      %s88 = sphi 0, %s72
      %s94 = sphi 0, %s96
      %s97 = sphi 0, %s94
      %s98 = sphi 0, %s97
      %s114 = sphi 0, %s98
      %s120 = sphi 0, %s122
      %s123 = sphi 0, %s120
      %s124 = sphi 0, %s123
      %s140 = sphi 0, %s124
      %s146 = sphi 0, %s148
      %s149 = sphi 0, %s146
      %s150 = sphi 0, %s149
      %s166 = sphi 0, %s150
      %s172 = sphi 0, %s174
      %s175 = sphi 0, %s172
      %s176 = sphi 0, %s175
      %s192 = sphi 0, %s176
    $region4: #{tpu_custom_call.1} parent=1 // loop_header_branch
      %19 = sbr.rel (%p17) target = $region8
    $region5: #{tpu_custom_call.1} parent=1 // loop_body
      %s21 = ssub.s32 %s16, 1
      %s22 = ssub.s32 %s16, 2
      %s23 = sadd.s32 %s16, 1
      %s25 = sadd.s32 %s24, 1
      %p28 = scmp.eq.s32.totalorder %s16, 1
      %p29 = scmp.ne.s32.totalorder %s24, %s26
      %p30 = scmp.eq.s32.totalorder %s16, 0
      %p31 = por %p29, %p30
      %p32 = scmp.ne.s32.totalorder %s24, %s26
      %p33 = scmp.eq.s32.totalorder %s21, 1
      %p34 = por %p32, %p33
      %p35 = scmp.ne.s32.totalorder %s26, %s27
      %p36 = scmp.eq.s32.totalorder %s21, 0
      %p37 = por %p35, %p36
      %p38 = scmp.ne.s32.totalorder %s26, %s27
      %p39 = scmp.eq.s32.totalorder %s22, 1
      %p40 = por %p38, %p39
      %p42 = scmp.ne.s32.totalorder %s27, %s41
      %p43 = scmp.eq.s32.totalorder %s22, 0
      %p44 = por %p42, %p43
      %s46 = sadd.s32 %s45, 1
      %p49 = scmp.eq.s32.totalorder %s16, 1
      %p50 = scmp.ne.s32.totalorder %s45, %s47
      %p51 = scmp.eq.s32.totalorder %s16, 0
      %p52 = por %p50, %p51
      %p53 = scmp.ne.s32.totalorder %s45, %s47
      %p54 = scmp.eq.s32.totalorder %s21, 1
      %p55 = por %p53, %p54
      %p56 = scmp.ne.s32.totalorder %s47, %s48
      %p57 = scmp.eq.s32.totalorder %s21, 0
      %p58 = por %p56, %p57
      %p59 = scmp.ne.s32.totalorder %s47, %s48
      %p60 = scmp.eq.s32.totalorder %s22, 1
      %p61 = por %p59, %p60
      %p63 = scmp.ne.s32.totalorder %s48, %s62
      %p64 = scmp.eq.s32.totalorder %s22, 0
      %p65 = por %p63, %p64
      %s66 = ssub.s32 %s16, %s23
      %p67 = scmp.eq.s32.totalorder %s66, 0
      %s69 = sadd.s32 %s68, 1
      %s70 = scalar_select %p67, %s68, %s69
      %p73 = pneg %p67
      %p74 = scmp.eq.s32.totalorder %s16, 1
      %p75 = por %p73, %p74
      %p76 = scmp.ne.s32.totalorder %s68, %s71
      %p77 = scmp.eq.s32.totalorder %s16, 0
      %p78 = por %p76, %p77
      %p79 = scmp.ne.s32.totalorder %s68, %s71
      %p80 = scmp.eq.s32.totalorder %s21, 1
      %p81 = por %p79, %p80
      %p82 = scmp.ne.s32.totalorder %s71, %s72
      %p83 = scmp.eq.s32.totalorder %s21, 0
      %p84 = por %p82, %p83
      %p85 = scmp.ne.s32.totalorder %s71, %s72
      %p86 = scmp.eq.s32.totalorder %s22, 1
      %p87 = por %p85, %p86
      %p89 = scmp.ne.s32.totalorder %s72, %s88
      %p90 = scmp.eq.s32.totalorder %s22, 0
      %p91 = por %p89, %p90
      %s92 = ssub.s32 %s16, %s23
      %p93 = scmp.eq.s32.totalorder %s92, 0
      %s95 = sadd.s32 %s94, 1
      %s96 = scalar_select %p93, %s94, %s95
      %p99 = pneg %p93
      %p100 = scmp.eq.s32.totalorder %s16, 1
      %p101 = por %p99, %p100
      %p102 = scmp.ne.s32.totalorder %s94, %s97
      %p103 = scmp.eq.s32.totalorder %s16, 0
      %p104 = por %p102, %p103
      %p105 = scmp.ne.s32.totalorder %s94, %s97
      %p106 = scmp.eq.s32.totalorder %s21, 1
      %p107 = por %p105, %p106
      %p108 = scmp.ne.s32.totalorder %s97, %s98
      %p109 = scmp.eq.s32.totalorder %s21, 0
      %p110 = por %p108, %p109
      %p111 = scmp.ne.s32.totalorder %s97, %s98
      %p112 = scmp.eq.s32.totalorder %s22, 1
      %p113 = por %p111, %p112
      %p115 = scmp.ne.s32.totalorder %s98, %s114
      %p116 = scmp.eq.s32.totalorder %s22, 0
      %p117 = por %p115, %p116
      %s118 = ssub.s32 %s16, %s23
      %p119 = scmp.eq.s32.totalorder %s118, 0
      %s121 = sadd.s32 %s120, 1
      %s122 = scalar_select %p119, %s120, %s121
      %p125 = pneg %p119
      %p126 = scmp.eq.s32.totalorder %s16, 1
      %p127 = por %p125, %p126
      %p128 = scmp.ne.s32.totalorder %s120, %s123
      %p129 = scmp.eq.s32.totalorder %s16, 0
      %p130 = por %p128, %p129
      %p131 = scmp.ne.s32.totalorder %s120, %s123
      %p132 = scmp.eq.s32.totalorder %s21, 1
      %p133 = por %p131, %p132
      %p134 = scmp.ne.s32.totalorder %s123, %s124
      %p135 = scmp.eq.s32.totalorder %s21, 0
      %p136 = por %p134, %p135
      %p137 = scmp.ne.s32.totalorder %s123, %s124
      %p138 = scmp.eq.s32.totalorder %s22, 1
      %p139 = por %p137, %p138
      %p141 = scmp.ne.s32.totalorder %s124, %s140
      %p142 = scmp.eq.s32.totalorder %s22, 0
      %p143 = por %p141, %p142
      %s144 = ssub.s32 %s16, %s23
      %p145 = scmp.eq.s32.totalorder %s144, 0
      %s147 = sadd.s32 %s146, 1
      %s148 = scalar_select %p145, %s146, %s147
      %p151 = pneg %p145
      %p152 = scmp.eq.s32.totalorder %s16, 1
      %p153 = por %p151, %p152
      %p154 = scmp.ne.s32.totalorder %s146, %s149
      %p155 = scmp.eq.s32.totalorder %s16, 0
      %p156 = por %p154, %p155
      %p157 = scmp.ne.s32.totalorder %s146, %s149
      %p158 = scmp.eq.s32.totalorder %s21, 1
      %p159 = por %p157, %p158
      %p160 = scmp.ne.s32.totalorder %s149, %s150
      %p161 = scmp.eq.s32.totalorder %s21, 0
      %p162 = por %p160, %p161
      %p163 = scmp.ne.s32.totalorder %s149, %s150
      %p164 = scmp.eq.s32.totalorder %s22, 1
      %p165 = por %p163, %p164
      %p167 = scmp.ne.s32.totalorder %s150, %s166
      %p168 = scmp.eq.s32.totalorder %s22, 0
      %p169 = por %p167, %p168
      %s170 = ssub.s32 %s16, %s23
      %p171 = scmp.eq.s32.totalorder %s170, 0
      %s173 = sadd.s32 %s172, 1
      %s174 = scalar_select %p171, %s172, %s173
      %p177 = pneg %p171
      %p178 = scmp.eq.s32.totalorder %s16, 1
      %p179 = por %p177, %p178
      %p180 = scmp.ne.s32.totalorder %s172, %s175
      %p181 = scmp.eq.s32.totalorder %s16, 0
      %p182 = por %p180, %p181
      %p183 = scmp.ne.s32.totalorder %s172, %s175
      %p184 = scmp.eq.s32.totalorder %s21, 1
      %p185 = por %p183, %p184
      %p186 = scmp.ne.s32.totalorder %s175, %s176
      %p187 = scmp.eq.s32.totalorder %s21, 0
      %p188 = por %p186, %p187
      %p189 = scmp.ne.s32.totalorder %s175, %s176
      %p190 = scmp.eq.s32.totalorder %s22, 1
      %p191 = por %p189, %p190
      %p193 = scmp.ne.s32.totalorder %s176, %s192
      %p194 = scmp.eq.s32.totalorder %s22, 0
      %p195 = por %p193, %p194
      %p196 = scmp.le.s32.totalorder 1, %s16
      %p197 = scmp.lt.s32.totalorder %s16, 3
      %p198 = pnand %p196, %p197
      %p199 = pneg %p198
      // Predicated region
      $region9: #{tpu_custom_call.1} parent=5 // pred_check
        _
      $region10: #{tpu_custom_call.1} parent=5 // pred_check_branch
        %201 = sbr.rel (%p198) target = $region12
      $region11: #{tpu_custom_call.1} parent=5 // pred_region
        %s202 = ssub.s32 %s16, 1
        // Predicated region
        $region13: #{tpu_custom_call.1} parent=11 // pred_check
          %p203 = pneg %p37
        $region14: #{tpu_custom_call.1} parent=11 // pred_check_branch
          %205 = sbr.rel (%p203) target = $region16
        $region15: #{tpu_custom_call.1} parent=11 // pred_region
          %s207 = ssub.s32 256, 256
          %208 = vsyncadd [#allocation3], %s207
          %s209 = sshll.u32 [#allocation2], 4
          %s210 = int_to_ptr.vmem [resolvable:$true] %s209
          %215 = dma.hbm_to_vmem [thread:$0]  %s0, 256, %s210, [#allocation3], 128, 128, 8
        $region16: #{tpu_custom_call.1} parent=11 // pred_fallthru
          _
        // Predicated region
        $region17: #{tpu_custom_call.1} parent=11 // pred_check
          %p216 = pneg %p58
        $region18: #{tpu_custom_call.1} parent=11 // pred_check_branch
          %218 = sbr.rel (%p216) target = $region20
        $region19: #{tpu_custom_call.1} parent=11 // pred_region
          _
        $region20: #{tpu_custom_call.1} parent=11 // pred_fallthru
          _
      $region12: #{tpu_custom_call.1} parent=5 // pred_fallthru
        _
      %p219 = scmp.lt.s32.totalorder %s16, 2
      // Predicated region
      $region21: #{tpu_custom_call.1} parent=5 // pred_check
        %p220 = pneg %p219
      $region22: #{tpu_custom_call.1} parent=5 // pred_check_branch
        %222 = sbr.rel (%p220) target = $region24
      $region23: #{tpu_custom_call.1} parent=5 // pred_region
        // Predicated region
        $region25: #{tpu_custom_call.1} parent=23 // pred_check
          %p223 = pneg %p78
        $region26: #{tpu_custom_call.1} parent=23 // pred_check_branch
          %225 = sbr.rel (%p223) target = $region28
        $region27: #{tpu_custom_call.1} parent=23 // pred_region
          %p226 = scmp.lt.s32.totalorder %s16, 1
          %s227 = scalar_select %p226, %s16, 1
          %s228 = smul.addr %s227, 4
          %s229 = smul.addr %s228, 8
          %s230 = scalar_lea.vmem %s2, %s229
        $region28: #{tpu_custom_call.1} parent=23 // pred_fallthru
          _
        // Predicated region
        $region29: #{tpu_custom_call.1} parent=23 // pred_check
          %p231 = pneg %p104
        $region30: #{tpu_custom_call.1} parent=23 // pred_check_branch
          %233 = sbr.rel (%p231) target = $region32
        $region31: #{tpu_custom_call.1} parent=23 // pred_region
          %p234 = scmp.lt.s32.totalorder %s16, 1
          %s235 = scalar_select %p234, %s16, 1
          %s236 = scalar_lea.vmem %s3, %s235
        $region32: #{tpu_custom_call.1} parent=23 // pred_fallthru
          _
        // Predicated region
        $region33: #{tpu_custom_call.1} parent=23 // pred_check
          %p237 = pneg %p130
        $region34: #{tpu_custom_call.1} parent=23 // pred_check_branch
          %239 = sbr.rel (%p237) target = $region36
        $region35: #{tpu_custom_call.1} parent=23 // pred_region
          %p240 = scmp.lt.s32.totalorder %s16, 1
          %s241 = scalar_select %p240, %s16, 1
          %s242 = smul.addr %s241, 4
          %s243 = smul.addr %s242, 8
          %s244 = scalar_lea.vmem %s4, %s243
        $region36: #{tpu_custom_call.1} parent=23 // pred_fallthru
          _
        // Predicated region
        $region37: #{tpu_custom_call.1} parent=23 // pred_check
          %p245 = pneg %p156
        $region38: #{tpu_custom_call.1} parent=23 // pred_check_branch
          %247 = sbr.rel (%p245) target = $region40
        $region39: #{tpu_custom_call.1} parent=23 // pred_region
          %p248 = scmp.lt.s32.totalorder %s16, 1
          %s249 = scalar_select %p248, %s16, 1
          %s250 = scalar_lea.vmem %s5, %s249
        $region40: #{tpu_custom_call.1} parent=23 // pred_fallthru
          _
      $region24: #{tpu_custom_call.1} parent=5 // pred_fallthru
        _
      %p251 = scmp.le.s32.totalorder 1, %s16
      %p252 = scmp.lt.s32.totalorder %s16, 3
      %p253 = pnand %p251, %p252
      %p254 = pneg %p253
      // Predicated region
      $region41: #{tpu_custom_call.1} parent=5 // pred_check
        _
      $region42: #{tpu_custom_call.1} parent=5 // pred_check_branch
        %256 = sbr.rel (%p253) target = $region44
      $region43: #{tpu_custom_call.1} parent=5 // pred_region
        %s257 = ssub.s32 %s16, 1
        // Predicated region
        $region45: #{tpu_custom_call.1} parent=43 // pred_check
          %p258 = pneg %p37
        $region46: #{tpu_custom_call.1} parent=43 // pred_check_branch
          %260 = sbr.rel (%p258) target = $region48
        $region47: #{tpu_custom_call.1} parent=43 // pred_region
          %261 = dma.done [#allocation3], 256
        $region48: #{tpu_custom_call.1} parent=43 // pred_fallthru
          _
        %p262 = pneg %p37
        %p263 = pneg %p34
        %p264 = pneg %p58
        %p265 = pneg %p55
        %p266 = scmp.lt.s32.totalorder %s21, 1
        %s267 = scalar_select %p266, %s21, 1
        %s268 = smul.addr %s267, 4
        %s269 = smul.addr %s268, 8
        %s270 = scalar_lea.vmem %s2, %s269
        %p271 = pneg %p84
        %p272 = pneg %p81
        %p273 = scmp.lt.s32.totalorder %s21, 1
        %s274 = scalar_select %p273, %s21, 1
        %s275 = scalar_lea.vmem %s3, %s274
        %p276 = pneg %p110
        %p277 = pneg %p107
        %p278 = scmp.lt.s32.totalorder %s21, 1
        %s279 = scalar_select %p278, %s21, 1
        %s280 = smul.addr %s279, 4
        %s281 = smul.addr %s280, 8
        %s282 = scalar_lea.vmem %s4, %s281
        %p283 = pneg %p136
        %p284 = pneg %p133
        %p285 = scmp.lt.s32.totalorder %s21, 1
        %s286 = scalar_select %p285, %s21, 1
        %s287 = scalar_lea.vmem %s5, %s286
        %p288 = pneg %p162
        %p289 = pneg %p159
        %p290 = pneg %p188
        %p291 = pneg %p185
        %s292 = sand.u32 %s175, 1
        %s293 = scalar_lea.sflag [#allocation4], %s292
        %s294 = sand.u32 %s175, 1
        %s295 = smul.addr %s294, 16
        %s296 = scalar_lea.vmem [#allocation5], %s295
        %p297 = scmp.lt.s32.totalorder %s21, 1
        %s298 = scalar_select %p297, %s21, 1
        %s299 = smul.addr %s298, 4
        %s300 = smul.addr %s299, 8
        %s301 = scalar_lea.vmem %s2, %s300
        %p302 = scmp.lt.s32.totalorder %s21, 1
        %s303 = scalar_select %p302, %s21, 1
        %s304 = scalar_lea.vmem %s3, %s303
        %p305 = scmp.lt.s32.totalorder %s21, 1
        %s306 = scalar_select %p305, %s21, 1
        %s307 = smul.addr %s306, 4
        %s308 = smul.addr %s307, 8
        %s309 = scalar_lea.vmem %s4, %s308
        %p310 = scmp.lt.s32.totalorder %s21, 1
        %s311 = scalar_select %p310, %s21, 1
        %s312 = scalar_lea.vmem %s5, %s311
        %v313 = vld [vmem:[#allocation2] sm:$0xff]
        %v314 = vld [vmem:[#allocation2 + $0x8] sm:$0xff]
        %v315 = vld [vmem:[%s1] sm:$0xff]
        %v316 = vld [vmem:[%s1 + $0x8] sm:$0xff]
        %v317 = vld [vmem:[%s1 + $0x10] sm:$0xff]
        %v318 = vld [vmem:[%s1 + $0x18] sm:$0xff]
        %v319 = vld [vmem:[%s301] sm:$0xff]
        %v320 = vld [vmem:[%s301 + $0x8] sm:$0xff]
        %v321 = vld [vmem:[%s301 + $0x10] sm:$0xff]
        %v322 = vld [vmem:[%s301 + $0x18] sm:$0xff]
        %v323 = vld [vmem:[%s304] sm:$0x1]
        %v325 = vlaneseq
        %v326 = vshrl.u32 %v325, 7
        %v327 = vsub.s32 0, %v326
        %v328 = vrot.slane %v323, %v327
        %vm330 = vcmask 261120
        %v332 = vsel %vm330, %v313, 0
        %v335 = vsel %vm330, %v314, 0
        %337 = vmatprep.subr.mxu0 0.0
        %338 = vmatpush1.msra.mxu0 0.0
        %339 = vmatprep.subr.mxu0 0.0
        %340 = vmatpush1.msra.mxu0 0.0
        %341 = vmatprep.subr.mxu0 0.0
        %342 = vmatpush1.msra.mxu0 0.0
        %343 = vmatprep.subr.mxu0 0.0
        %344 = vmatpush1.msra.mxu0 0.0
        %345 = vmatprep.subr.mxu0 0.0
        %346 = vmatpush1.msra.mxu0 0.0
        %347 = vmatprep.subr.mxu0 0.0
        %348 = vmatpush1.msra.mxu0 0.0
        %349 = vmatprep.subr.mxu0 0.0
        %350 = vmatpush1.msra.mxu0 0.0
        %351 = vmatprep.subr.mxu0 0.0
        %352 = vmatpush1.msra.mxu0 0.0
        %353 = vmatprep.subr.mxu0 0.0
        %354 = vmatpush1.msra.mxu0 0.0
        %355 = vmatprep.subr.mxu0 0.0
        %356 = vmatpush1.msra.mxu0 0.0
        %357 = vmatprep.subr.mxu0 0.0
        %358 = vmatpush1.msra.mxu0 0.0
        %359 = vmatprep.subr.mxu0 0.0
        %360 = vmatpush1.msra.mxu0 0.0
        %361 = vmatprep.subr.mxu0 0.0
        %362 = vmatpush1.msra.mxu0 %v322
        %363 = vmatprep.subr.mxu0 0.0
        %364 = vmatpush1.msra.mxu0 %v321
        %365 = vmatprep.subr.mxu0 0.0
        %366 = vmatpush1.msra.mxu0 %v320
        %367 = vmatprep.subr.mxu0 0.0
        %368 = vmatpush1.msra.mxu0 %v319
        %369 = vmatprep.subr.mxu0 0.0
        %370 = vmatpush2.msra.mxu0 0.0
        %371 = vmatprep.subr.mxu0 0.0
        %372 = vmatpush2.msra.mxu0 0.0
        %373 = vmatprep.subr.mxu0 0.0
        %374 = vmatpush2.msra.mxu0 0.0
        %375 = vmatprep.subr.mxu0 0.0
        %376 = vmatpush2.msra.mxu0 0.0
        %377 = vmatprep.subr.mxu0 0.0
        %378 = vmatpush2.msra.mxu0 0.0
        %379 = vmatprep.subr.mxu0 0.0
        %380 = vmatpush2.msra.mxu0 0.0
        %381 = vmatprep.subr.mxu0 0.0
        %382 = vmatpush2.msra.mxu0 0.0
        %383 = vmatprep.subr.mxu0 0.0
        %384 = vmatpush2.msra.mxu0 0.0
        %385 = vmatprep.subr.mxu0 0.0
        %386 = vmatpush2.msra.mxu0 0.0
        %387 = vmatprep.subr.mxu0 0.0
        %388 = vmatpush2.msra.mxu0 0.0
        %389 = vmatprep.subr.mxu0 0.0
        %390 = vmatpush2.msra.mxu0 0.0
        %391 = vmatprep.subr.mxu0 0.0
        %392 = vmatpush2.msra.mxu0 0.0
        %393 = vmatprep.subr.mxu0 0.0
        %394 = vmatpush2.msra.mxu0 0.0
        %395 = vmatprep.subr.mxu0 0.0
        %396 = vmatpush2.msra.mxu0 0.0
        %397 = vmatprep.subr.mxu0 0.0
        %398 = vmatpush2.msra.mxu0 0.0
        %399 = vmatprep.subr.mxu0 0.0
        %400 = vmatpush2.msra.mxu0 0.0
        %401 = vmatprep.mubr.f32.mxu0 0.0
        %402 = vmatmul.mubr.f32.gmra.mxu0 %v332
        %v403 = vpop.f32.mrf.mxu0
        %v404 = vadd.f32 %v328, %v403
        %v405 = vpop.f32.mrf.mxu0
        %406 = vmatprep.mubr.f32.mxu0 0.0
        %407 = vmatmul.mubr.f32.gmra.mxu0 %v335
        %v408 = vpop.f32.mrf.mxu0
        %v409 = vadd.f32 %v328, %v408
        %v410 = vpop.f32.mrf.mxu0
        %411 = vdwg.mxu0
        %v412 = vld [vmem:[%s309] sm:$0xff]
        %v413 = vld [vmem:[%s309 + $0x8] sm:$0xff]
        %v414 = vld [vmem:[%s309 + $0x10] sm:$0xff]
        %v415 = vld [vmem:[%s309 + $0x18] sm:$0xff]
        %v416 = vld [vmem:[%s312] sm:$0x1]
        %v418 = vlaneseq
        %v419 = vshrl.u32 %v418, 7
        %v420 = vsub.s32 0, %v419
        %v421 = vrot.slane %v416, %v420
        %v424 = vsel %vm330, %v315, 0
        %v427 = vsel %vm330, %v316, 0
        %v430 = vsel %vm330, %v317, 0
        %v433 = vsel %vm330, %v318, 0
        %435 = vmatprep.subr.mxu0 0.0
        %436 = vmatpush1.msra.mxu0 0.0
        %437 = vmatprep.subr.mxu0 0.0
        %438 = vmatpush1.msra.mxu0 0.0
        %439 = vmatprep.subr.mxu0 0.0
        %440 = vmatpush1.msra.mxu0 0.0
        %441 = vmatprep.subr.mxu0 0.0
        %442 = vmatpush1.msra.mxu0 0.0
        %443 = vmatprep.subr.mxu0 0.0
        %444 = vmatpush1.msra.mxu0 0.0
        %445 = vmatprep.subr.mxu0 0.0
        %446 = vmatpush1.msra.mxu0 0.0
        %447 = vmatprep.subr.mxu0 0.0
        %448 = vmatpush1.msra.mxu0 0.0
        %449 = vmatprep.subr.mxu0 0.0
        %450 = vmatpush1.msra.mxu0 0.0
        %451 = vmatprep.subr.mxu0 0.0
        %452 = vmatpush1.msra.mxu0 0.0
        %453 = vmatprep.subr.mxu0 0.0
        %454 = vmatpush1.msra.mxu0 0.0
        %455 = vmatprep.subr.mxu0 0.0
        %456 = vmatpush1.msra.mxu0 0.0
        %457 = vmatprep.subr.mxu0 0.0
        %458 = vmatpush1.msra.mxu0 0.0
        %459 = vmatprep.subr.mxu0 0.0
        %460 = vmatpush1.msra.mxu0 %v415
        %461 = vmatprep.subr.mxu0 0.0
        %462 = vmatpush1.msra.mxu0 %v414
        %463 = vmatprep.subr.mxu0 0.0
        %464 = vmatpush1.msra.mxu0 %v413
        %465 = vmatprep.subr.mxu0 0.0
        %466 = vmatpush1.msra.mxu0 %v412
        %467 = vmatprep.subr.mxu0 0.0
        %468 = vmatpush2.msra.mxu0 0.0
        %469 = vmatprep.subr.mxu0 0.0
        %470 = vmatpush2.msra.mxu0 0.0
        %471 = vmatprep.subr.mxu0 0.0
        %472 = vmatpush2.msra.mxu0 0.0
        %473 = vmatprep.subr.mxu0 0.0
        %474 = vmatpush2.msra.mxu0 0.0
        %475 = vmatprep.subr.mxu0 0.0
        %476 = vmatpush2.msra.mxu0 0.0
        %477 = vmatprep.subr.mxu0 0.0
        %478 = vmatpush2.msra.mxu0 0.0
        %479 = vmatprep.subr.mxu0 0.0
        %480 = vmatpush2.msra.mxu0 0.0
        %481 = vmatprep.subr.mxu0 0.0
        %482 = vmatpush2.msra.mxu0 0.0
        %483 = vmatprep.subr.mxu0 0.0
        %484 = vmatpush2.msra.mxu0 0.0
        %485 = vmatprep.subr.mxu0 0.0
        %486 = vmatpush2.msra.mxu0 0.0
        %487 = vmatprep.subr.mxu0 0.0
        %488 = vmatpush2.msra.mxu0 0.0
        %489 = vmatprep.subr.mxu0 0.0
        %490 = vmatpush2.msra.mxu0 0.0
        %491 = vmatprep.subr.mxu0 0.0
        %492 = vmatpush2.msra.mxu0 0.0
        %493 = vmatprep.subr.mxu0 0.0
        %494 = vmatpush2.msra.mxu0 0.0
        %495 = vmatprep.subr.mxu0 0.0
        %496 = vmatpush2.msra.mxu0 0.0
        %497 = vmatprep.subr.mxu0 0.0
        %498 = vmatpush2.msra.mxu0 0.0
        %499 = vmatprep.mubr.f32.mxu0 0.0
        %500 = vmatmul.mubr.f32.gmra.mxu0 %v424
        %v501 = vpop.f32.mrf.mxu0
        %v502 = vadd.f32 %v421, %v501
        %v503 = vpop.f32.mrf.mxu0
        %504 = vmatprep.mubr.f32.mxu0 0.0
        %505 = vmatmul.mubr.f32.gmra.mxu0 %v427
        %v506 = vpop.f32.mrf.mxu0
        %v507 = vadd.f32 %v421, %v506
        %v508 = vpop.f32.mrf.mxu0
        %509 = vmatprep.mubr.f32.mxu0 0.0
        %510 = vmatmul.mubr.f32.gmra.mxu0 %v430
        %v511 = vpop.f32.mrf.mxu0
        %v512 = vadd.f32 %v421, %v511
        %v513 = vpop.f32.mrf.mxu0
        %514 = vmatprep.mubr.f32.mxu0 0.0
        %515 = vmatmul.mubr.f32.gmra.mxu0 %v433
        %v516 = vpop.f32.mrf.mxu0
        %v517 = vadd.f32 %v421, %v516
        %v518 = vpop.f32.mrf.mxu0
        %519 = vdwg.mxu0
        %vm520 = vcmask 64512
        %v522 = vsel %vm520, %v404, 0
        %v525 = vsel %vm520, %v502, 0
        %v528 = vsel %vm520, %v507, 0
        %530 = vmatprep.subr.mxu0 0.0
        %531 = vmatpush1.xpose.msra.mxu0 0.0
        %532 = vmatprep.subr.mxu0 0.0
        %533 = vmatpush1.xpose.msra.mxu0 0.0
        %534 = vmatprep.subr.mxu0 0.0
        %535 = vmatpush1.xpose.msra.mxu0 0.0
        %536 = vmatprep.subr.mxu0 0.0
        %537 = vmatpush1.xpose.msra.mxu0 0.0
        %538 = vmatprep.subr.mxu0 0.0
        %539 = vmatpush1.xpose.msra.mxu0 0.0
        %540 = vmatprep.subr.mxu0 0.0
        %541 = vmatpush1.xpose.msra.mxu0 0.0
        %542 = vmatprep.subr.mxu0 0.0
        %543 = vmatpush1.xpose.msra.mxu0 0.0
        %544 = vmatprep.subr.mxu0 0.0
        %545 = vmatpush1.xpose.msra.mxu0 0.0
        %546 = vmatprep.subr.mxu0 0.0
        %547 = vmatpush1.xpose.msra.mxu0 0.0
        %548 = vmatprep.subr.mxu0 0.0
        %549 = vmatpush1.xpose.msra.mxu0 0.0
        %550 = vmatprep.subr.mxu0 0.0
        %551 = vmatpush1.xpose.msra.mxu0 0.0
        %552 = vmatprep.subr.mxu0 0.0
        %553 = vmatpush1.xpose.msra.mxu0 0.0
        %554 = vmatprep.subr.mxu0 0.0
        %555 = vmatpush1.xpose.msra.mxu0 0.0
        %556 = vmatprep.subr.mxu0 0.0
        %557 = vmatpush1.xpose.msra.mxu0 0.0
        %558 = vmatprep.subr.mxu0 0.0
        %559 = vmatpush1.xpose.msra.mxu0 %v528
        %560 = vmatprep.subr.mxu0 0.0
        %561 = vmatpush1.xpose.msra.mxu0 %v525
        %562 = vmatprep.subr.mxu0 0.0
        %563 = vmatpush2.xpose.msra.mxu0 0.0
        %564 = vmatprep.subr.mxu0 0.0
        %565 = vmatpush2.xpose.msra.mxu0 0.0
        %566 = vmatprep.subr.mxu0 0.0
        %567 = vmatpush2.xpose.msra.mxu0 0.0
        %568 = vmatprep.subr.mxu0 0.0
        %569 = vmatpush2.xpose.msra.mxu0 0.0
        %570 = vmatprep.subr.mxu0 0.0
        %571 = vmatpush2.xpose.msra.mxu0 0.0
        %572 = vmatprep.subr.mxu0 0.0
        %573 = vmatpush2.xpose.msra.mxu0 0.0
        %574 = vmatprep.subr.mxu0 0.0
        %575 = vmatpush2.xpose.msra.mxu0 0.0
        %576 = vmatprep.subr.mxu0 0.0
        %577 = vmatpush2.xpose.msra.mxu0 0.0
        %578 = vmatprep.subr.mxu0 0.0
        %579 = vmatpush2.xpose.msra.mxu0 0.0
        %580 = vmatprep.subr.mxu0 0.0
        %581 = vmatpush2.xpose.msra.mxu0 0.0
        %582 = vmatprep.subr.mxu0 0.0
        %583 = vmatpush2.xpose.msra.mxu0 0.0
        %584 = vmatprep.subr.mxu0 0.0
        %585 = vmatpush2.xpose.msra.mxu0 0.0
        %586 = vmatprep.subr.mxu0 0.0
        %587 = vmatpush2.xpose.msra.mxu0 0.0
        %588 = vmatprep.subr.mxu0 0.0
        %589 = vmatpush2.xpose.msra.mxu0 0.0
        %590 = vmatprep.subr.mxu0 0.0
        %591 = vmatpush2.xpose.msra.mxu0 0.0
        %592 = vmatprep.subr.mxu0 0.0
        %593 = vmatpush2.xpose.msra.mxu0 0.0
        %594 = vmatprep.mubr.f32.mxu0 0.0
        %595 = vmatmul.mubr.f32.gmra.mxu0 %v522
        %v596 = vpop.f32.mrf.mxu0
        %v597 = vadd.f32 0.0, %v596
        %v598 = vpop.f32.mrf.mxu0
        %599 = vdwg.mxu0
        %v601 = vsel %vm520, %v409, 0
        %v604 = vsel %vm520, %v512, 0
        %v607 = vsel %vm520, %v517, 0
        %609 = vmatprep.subr.mxu0 0.0
        %610 = vmatpush1.xpose.msra.mxu0 0.0
        %611 = vmatprep.subr.mxu0 0.0
        %612 = vmatpush1.xpose.msra.mxu0 0.0
        %613 = vmatprep.subr.mxu0 0.0
        %614 = vmatpush1.xpose.msra.mxu0 0.0
        %615 = vmatprep.subr.mxu0 0.0
        %616 = vmatpush1.xpose.msra.mxu0 0.0
        %617 = vmatprep.subr.mxu0 0.0
        %618 = vmatpush1.xpose.msra.mxu0 0.0
        %619 = vmatprep.subr.mxu0 0.0
        %620 = vmatpush1.xpose.msra.mxu0 0.0
        %621 = vmatprep.subr.mxu0 0.0
        %622 = vmatpush1.xpose.msra.mxu0 0.0
        %623 = vmatprep.subr.mxu0 0.0
        %624 = vmatpush1.xpose.msra.mxu0 0.0
        %625 = vmatprep.subr.mxu0 0.0
        %626 = vmatpush1.xpose.msra.mxu0 0.0
        %627 = vmatprep.subr.mxu0 0.0
        %628 = vmatpush1.xpose.msra.mxu0 0.0
        %629 = vmatprep.subr.mxu0 0.0
        %630 = vmatpush1.xpose.msra.mxu0 0.0
        %631 = vmatprep.subr.mxu0 0.0
        %632 = vmatpush1.xpose.msra.mxu0 0.0
        %633 = vmatprep.subr.mxu0 0.0
        %634 = vmatpush1.xpose.msra.mxu0 0.0
        %635 = vmatprep.subr.mxu0 0.0
        %636 = vmatpush1.xpose.msra.mxu0 0.0
        %637 = vmatprep.subr.mxu0 0.0
        %638 = vmatpush1.xpose.msra.mxu0 %v607
        %639 = vmatprep.subr.mxu0 0.0
        %640 = vmatpush1.xpose.msra.mxu0 %v604
        %641 = vmatprep.subr.mxu0 0.0
        %642 = vmatpush2.xpose.msra.mxu0 0.0
        %643 = vmatprep.subr.mxu0 0.0
        %644 = vmatpush2.xpose.msra.mxu0 0.0
        %645 = vmatprep.subr.mxu0 0.0
        %646 = vmatpush2.xpose.msra.mxu0 0.0
        %647 = vmatprep.subr.mxu0 0.0
        %648 = vmatpush2.xpose.msra.mxu0 0.0
        %649 = vmatprep.subr.mxu0 0.0
        %650 = vmatpush2.xpose.msra.mxu0 0.0
        %651 = vmatprep.subr.mxu0 0.0
        %652 = vmatpush2.xpose.msra.mxu0 0.0
        %653 = vmatprep.subr.mxu0 0.0
        %654 = vmatpush2.xpose.msra.mxu0 0.0
        %655 = vmatprep.subr.mxu0 0.0
        %656 = vmatpush2.xpose.msra.mxu0 0.0
        %657 = vmatprep.subr.mxu0 0.0
        %658 = vmatpush2.xpose.msra.mxu0 0.0
        %659 = vmatprep.subr.mxu0 0.0
        %660 = vmatpush2.xpose.msra.mxu0 0.0
        %661 = vmatprep.subr.mxu0 0.0
        %662 = vmatpush2.xpose.msra.mxu0 0.0
        %663 = vmatprep.subr.mxu0 0.0
        %664 = vmatpush2.xpose.msra.mxu0 0.0
        %665 = vmatprep.subr.mxu0 0.0
        %666 = vmatpush2.xpose.msra.mxu0 0.0
        %667 = vmatprep.subr.mxu0 0.0
        %668 = vmatpush2.xpose.msra.mxu0 0.0
        %669 = vmatprep.subr.mxu0 0.0
        %670 = vmatpush2.xpose.msra.mxu0 0.0
        %671 = vmatprep.subr.mxu0 0.0
        %672 = vmatpush2.xpose.msra.mxu0 0.0
        %673 = vmatprep.mubr.f32.mxu0 0.0
        %674 = vmatmul.mubr.f32.gmra.mxu0 %v601
        %v675 = vpop.f32.mrf.mxu0
        %v676 = vadd.f32 0.0, %v675
        %v677 = vpop.f32.mrf.mxu0
        %678 = vdwg.mxu0
        %v679 = vmul.f32 %v597, 0.35355338
        %v680 = vmul.f32 %v676, 0.35355338
        %vm681 = vcmask 130048
        %v682 = vsel %vm681, %v679, -inf
        %v683 = vrot.slane %v682, 4
        %v684 = vmax.f32 %v682, %v683
        %v685 = vrot.slane %v684, 2
        %v686 = vmax.f32 %v684, %v685
        %v687 = vrot.slane %v686, 1
        %v688 = vmax.f32 %v686, %v687
        %v689 = vsel %vm681, %v680, -inf
        %v690 = vrot.slane %v689, 4
        %v691 = vmax.f32 %v689, %v690
        %v692 = vrot.slane %v691, 2
        %v693 = vmax.f32 %v691, %v692
        %v694 = vrot.slane %v693, 1
        %v695 = vmax.f32 %v693, %v694
        %v696 = vsub.f32 %v679, %v688
        %v697 = vsub.f32 %v680, %v695
        %v698 = vmul.f32 %v696, 1.442695
        %v699 = vpow.pop %v698
        %v700 = vmul.f32 %v697, 1.442695
        %v701 = vpow.pop %v700
        %v702 = vsel %vm681, %v699, 0.0
        %v703 = vrot.slane %v702, 4
        %v704 = vadd.f32 %v702, %v703
        %v705 = vrot.slane %v704, 2
        %v706 = vadd.f32 %v704, %v705
        %v707 = vrot.slane %v706, 1
        %v708 = vadd.f32 %v706, %v707
        %v709 = vsel %vm681, %v701, 0.0
        %v710 = vrot.slane %v709, 4
        %v711 = vadd.f32 %v709, %v710
        %v712 = vrot.slane %v711, 2
        %v713 = vadd.f32 %v711, %v712
        %v714 = vrot.slane %v713, 1
        %v715 = vadd.f32 %v713, %v714
        %v716 = vrcp.pop %v708
        %v717 = vrcp.pop %v715
        %v718 = vmul.f32 %v699, %v716
        %v719 = vmul.f32 %v701, %v717
        %v720 = vsel %vm681, %v718, 0.0
        %721 = vadd.xlane.f32.xlu0 %v720
        %v722 = vpop.xlane.xlu0 %721
        %v723 = vsel %vm681, %v719, 0.0
        %724 = vadd.xlane.f32.xlu0 %v723
        %v725 = vpop.xlane.xlu0 %724
        %v726 = vadd.f32 %v722, 0.001
        %v727 = vadd.f32 %v725, 0.001
        %728 = vrot.lane.b32.xlu0 %v502, 112
        %v729 = vpop.permute.xlu0 %728
        %730 = vrot.lane.b32.xlu0 %v507, 112
        %v731 = vpop.permute.xlu0 %730
        %v735 = vsel %vm681, %v718, 0
        %737 = vmatprep.subr.mxu0 0.0
        %738 = vmatpush1.msra.mxu0 0.0
        %739 = vmatprep.subr.mxu0 0.0
        %740 = vmatpush1.msra.mxu0 0.0
        %741 = vmatprep.subr.mxu0 0.0
        %742 = vmatpush1.msra.mxu0 0.0
        %743 = vmatprep.subr.mxu0 0.0
        %744 = vmatpush1.msra.mxu0 0.0
        %745 = vmatprep.subr.mxu0 0.0
        %746 = vmatpush1.msra.mxu0 0.0
        %747 = vmatprep.subr.mxu0 0.0
        %748 = vmatpush1.msra.mxu0 0.0
        %749 = vmatprep.subr.mxu0 0.0
        %750 = vmatpush1.msra.mxu0 0.0
        %751 = vmatprep.subr.mxu0 0.0
        %752 = vmatpush1.msra.mxu0 0.0
        %753 = vmatprep.subr.mxu0 0.0
        %754 = vmatpush1.msra.mxu0 0.0
        %755 = vmatprep.subr.mxu0 0.0
        %756 = vmatpush1.msra.mxu0 0.0
        %757 = vmatprep.subr.mxu0 0.0
        %758 = vmatpush1.msra.mxu0 0.0
        %759 = vmatprep.subr.mxu0 0.0
        %760 = vmatpush1.msra.mxu0 0.0
        %761 = vmatprep.subr.mxu0 0.0
        %762 = vmatpush1.msra.mxu0 0.0
        %763 = vmatprep.subr.mxu0 0.0
        %764 = vmatpush1.msra.mxu0 0.0
        %765 = vmatprep.subr.mxu0 0.0
        %766 = vmatpush1.msra.mxu0 %v731
        %767 = vmatprep.subr.mxu0 0.0
        %768 = vmatpush1.msra.mxu0 %v729
        %769 = vmatprep.subr.mxu0 0.0
        %770 = vmatpush2.msra.mxu0 0.0
        %771 = vmatprep.subr.mxu0 0.0
        %772 = vmatpush2.msra.mxu0 0.0
        %773 = vmatprep.subr.mxu0 0.0
        %774 = vmatpush2.msra.mxu0 0.0
        %775 = vmatprep.subr.mxu0 0.0
        %776 = vmatpush2.msra.mxu0 0.0
        %777 = vmatprep.subr.mxu0 0.0
        %778 = vmatpush2.msra.mxu0 0.0
        %779 = vmatprep.subr.mxu0 0.0
        %780 = vmatpush2.msra.mxu0 0.0
        %781 = vmatprep.subr.mxu0 0.0
        %782 = vmatpush2.msra.mxu0 0.0
        %783 = vmatprep.subr.mxu0 0.0
        %784 = vmatpush2.msra.mxu0 0.0
        %785 = vmatprep.subr.mxu0 0.0
        %786 = vmatpush2.msra.mxu0 0.0
        %787 = vmatprep.subr.mxu0 0.0
        %788 = vmatpush2.msra.mxu0 0.0
        %789 = vmatprep.subr.mxu0 0.0
        %790 = vmatpush2.msra.mxu0 0.0
        %791 = vmatprep.subr.mxu0 0.0
        %792 = vmatpush2.msra.mxu0 0.0
        %793 = vmatprep.subr.mxu0 0.0
        %794 = vmatpush2.msra.mxu0 0.0
        %795 = vmatprep.subr.mxu0 0.0
        %796 = vmatpush2.msra.mxu0 0.0
        %797 = vmatprep.subr.mxu0 0.0
        %798 = vmatpush2.msra.mxu0 0.0
        %799 = vmatprep.subr.mxu0 0.0
        %800 = vmatpush2.msra.mxu0 0.0
        %801 = vmatprep.mubr.f32.mxu0 0.0
        %802 = vmatmul.mubr.f32.gmra.mxu0 %v735
        %v803 = vpop.f32.mrf.mxu0
        %v804 = vadd.f32 0.0, %v803
        %v805 = vpop.f32.mrf.mxu0
        %806 = vdwg.mxu0
        %807 = vrot.lane.b32.xlu0 %v512, 112
        %v808 = vpop.permute.xlu0 %807
        %809 = vrot.lane.b32.xlu0 %v517, 112
        %v810 = vpop.permute.xlu0 %809
        %v814 = vsel %vm681, %v719, 0
        %816 = vmatprep.subr.mxu0 0.0
        %817 = vmatpush1.msra.mxu0 0.0
        %818 = vmatprep.subr.mxu0 0.0
        %819 = vmatpush1.msra.mxu0 0.0
        %820 = vmatprep.subr.mxu0 0.0
        %821 = vmatpush1.msra.mxu0 0.0
        %822 = vmatprep.subr.mxu0 0.0
        %823 = vmatpush1.msra.mxu0 0.0
        %824 = vmatprep.subr.mxu0 0.0
        %825 = vmatpush1.msra.mxu0 0.0
        %826 = vmatprep.subr.mxu0 0.0
        %827 = vmatpush1.msra.mxu0 0.0
        %828 = vmatprep.subr.mxu0 0.0
        %829 = vmatpush1.msra.mxu0 0.0
        %830 = vmatprep.subr.mxu0 0.0
        %831 = vmatpush1.msra.mxu0 0.0
        %832 = vmatprep.subr.mxu0 0.0
        %833 = vmatpush1.msra.mxu0 0.0
        %834 = vmatprep.subr.mxu0 0.0
        %835 = vmatpush1.msra.mxu0 0.0
        %836 = vmatprep.subr.mxu0 0.0
        %837 = vmatpush1.msra.mxu0 0.0
        %838 = vmatprep.subr.mxu0 0.0
        %839 = vmatpush1.msra.mxu0 0.0
        %840 = vmatprep.subr.mxu0 0.0
        %841 = vmatpush1.msra.mxu0 0.0
        %842 = vmatprep.subr.mxu0 0.0
        %843 = vmatpush1.msra.mxu0 0.0
        %844 = vmatprep.subr.mxu0 0.0
        %845 = vmatpush1.msra.mxu0 %v810
        %846 = vmatprep.subr.mxu0 0.0
        %847 = vmatpush1.msra.mxu0 %v808
        %848 = vmatprep.subr.mxu0 0.0
        %849 = vmatpush2.msra.mxu0 0.0
        %850 = vmatprep.subr.mxu0 0.0
        %851 = vmatpush2.msra.mxu0 0.0
        %852 = vmatprep.subr.mxu0 0.0
        %853 = vmatpush2.msra.mxu0 0.0
        %854 = vmatprep.subr.mxu0 0.0
        %855 = vmatpush2.msra.mxu0 0.0
        %856 = vmatprep.subr.mxu0 0.0
        %857 = vmatpush2.msra.mxu0 0.0
        %858 = vmatprep.subr.mxu0 0.0
        %859 = vmatpush2.msra.mxu0 0.0
        %860 = vmatprep.subr.mxu0 0.0
        %861 = vmatpush2.msra.mxu0 0.0
        %862 = vmatprep.subr.mxu0 0.0
        %863 = vmatpush2.msra.mxu0 0.0
        %864 = vmatprep.subr.mxu0 0.0
        %865 = vmatpush2.msra.mxu0 0.0
        %866 = vmatprep.subr.mxu0 0.0
        %867 = vmatpush2.msra.mxu0 0.0
        %868 = vmatprep.subr.mxu0 0.0
        %869 = vmatpush2.msra.mxu0 0.0
        %870 = vmatprep.subr.mxu0 0.0
        %871 = vmatpush2.msra.mxu0 0.0
        %872 = vmatprep.subr.mxu0 0.0
        %873 = vmatpush2.msra.mxu0 0.0
        %874 = vmatprep.subr.mxu0 0.0
        %875 = vmatpush2.msra.mxu0 0.0
        %876 = vmatprep.subr.mxu0 0.0
        %877 = vmatpush2.msra.mxu0 0.0
        %878 = vmatprep.subr.mxu0 0.0
        %879 = vmatpush2.msra.mxu0 0.0
        %880 = vmatprep.mubr.f32.mxu0 0.0
        %881 = vmatmul.mubr.f32.gmra.mxu0 %v814
        %v882 = vpop.f32.mrf.mxu0
        %v883 = vadd.f32 0.0, %v882
        %v884 = vpop.f32.mrf.mxu0
        %885 = vdwg.mxu0
        %v886 = vrcp.pop %v726
        %v887 = vmul.f32 %v804, %v886
        %v888 = vrcp.pop %v727
        %v889 = vmul.f32 %v883, %v888
        %890 = vrot.lane.b32.xlu0 %v404, 120
        %v891 = vpop.permute.xlu0 %890
        %892 = vrot.lane.b32.xlu0 %v502, 120
        %v893 = vpop.permute.xlu0 %892
        %894 = vrot.lane.b32.xlu0 %v507, 120
        %v895 = vpop.permute.xlu0 %894
        %v896 = vsel %vm520, %v891, 0
        %v898 = vsel %vm520, %v893, 0
        %v900 = vsel %vm520, %v895, 0
        %902 = vmatprep.subr.mxu0 0.0
        %903 = vmatpush1.xpose.msra.mxu0 0.0
        %904 = vmatprep.subr.mxu0 0.0
        %905 = vmatpush1.xpose.msra.mxu0 0.0
        %906 = vmatprep.subr.mxu0 0.0
        %907 = vmatpush1.xpose.msra.mxu0 0.0
        %908 = vmatprep.subr.mxu0 0.0
        %909 = vmatpush1.xpose.msra.mxu0 0.0
        %910 = vmatprep.subr.mxu0 0.0
        %911 = vmatpush1.xpose.msra.mxu0 0.0
        %912 = vmatprep.subr.mxu0 0.0
        %913 = vmatpush1.xpose.msra.mxu0 0.0
        %914 = vmatprep.subr.mxu0 0.0
        %915 = vmatpush1.xpose.msra.mxu0 0.0
        %916 = vmatprep.subr.mxu0 0.0
        %917 = vmatpush1.xpose.msra.mxu0 0.0
        %918 = vmatprep.subr.mxu0 0.0
        %919 = vmatpush1.xpose.msra.mxu0 0.0
        %920 = vmatprep.subr.mxu0 0.0
        %921 = vmatpush1.xpose.msra.mxu0 0.0
        %922 = vmatprep.subr.mxu0 0.0
        %923 = vmatpush1.xpose.msra.mxu0 0.0
        %924 = vmatprep.subr.mxu0 0.0
        %925 = vmatpush1.xpose.msra.mxu0 0.0
        %926 = vmatprep.subr.mxu0 0.0
        %927 = vmatpush1.xpose.msra.mxu0 0.0
        %928 = vmatprep.subr.mxu0 0.0
        %929 = vmatpush1.xpose.msra.mxu0 0.0
        %930 = vmatprep.subr.mxu0 0.0
        %931 = vmatpush1.xpose.msra.mxu0 %v900
        %932 = vmatprep.subr.mxu0 0.0
        %933 = vmatpush1.xpose.msra.mxu0 %v898
        %934 = vmatprep.subr.mxu0 0.0
        %935 = vmatpush2.xpose.msra.mxu0 0.0
        %936 = vmatprep.subr.mxu0 0.0
        %937 = vmatpush2.xpose.msra.mxu0 0.0
        %938 = vmatprep.subr.mxu0 0.0
        %939 = vmatpush2.xpose.msra.mxu0 0.0
        %940 = vmatprep.subr.mxu0 0.0
        %941 = vmatpush2.xpose.msra.mxu0 0.0
        %942 = vmatprep.subr.mxu0 0.0
        %943 = vmatpush2.xpose.msra.mxu0 0.0
        %944 = vmatprep.subr.mxu0 0.0
        %945 = vmatpush2.xpose.msra.mxu0 0.0
        %946 = vmatprep.subr.mxu0 0.0
        %947 = vmatpush2.xpose.msra.mxu0 0.0
        %948 = vmatprep.subr.mxu0 0.0
        %949 = vmatpush2.xpose.msra.mxu0 0.0
        %950 = vmatprep.subr.mxu0 0.0
        %951 = vmatpush2.xpose.msra.mxu0 0.0
        %952 = vmatprep.subr.mxu0 0.0
        %953 = vmatpush2.xpose.msra.mxu0 0.0
        %954 = vmatprep.subr.mxu0 0.0
        %955 = vmatpush2.xpose.msra.mxu0 0.0
        %956 = vmatprep.subr.mxu0 0.0
        %957 = vmatpush2.xpose.msra.mxu0 0.0
        %958 = vmatprep.subr.mxu0 0.0
        %959 = vmatpush2.xpose.msra.mxu0 0.0
        %960 = vmatprep.subr.mxu0 0.0
        %961 = vmatpush2.xpose.msra.mxu0 0.0
        %962 = vmatprep.subr.mxu0 0.0
        %963 = vmatpush2.xpose.msra.mxu0 0.0
        %964 = vmatprep.subr.mxu0 0.0
        %965 = vmatpush2.xpose.msra.mxu0 0.0
        %966 = vmatprep.mubr.f32.mxu0 0.0
        %967 = vmatmul.mubr.f32.gmra.mxu0 %v896
        %v968 = vpop.f32.mrf.mxu0
        %v969 = vadd.f32 0.0, %v968
        %v970 = vpop.f32.mrf.mxu0
        %971 = vdwg.mxu0
        %972 = vrot.lane.b32.xlu0 %v409, 120
        %v973 = vpop.permute.xlu0 %972
        %974 = vrot.lane.b32.xlu0 %v512, 120
        %v975 = vpop.permute.xlu0 %974
        %976 = vrot.lane.b32.xlu0 %v517, 120
        %v977 = vpop.permute.xlu0 %976
        %v978 = vsel %vm520, %v973, 0
        %v980 = vsel %vm520, %v975, 0
        %v982 = vsel %vm520, %v977, 0
        %984 = vmatprep.subr.mxu0 0.0
        %985 = vmatpush1.xpose.msra.mxu0 0.0
        %986 = vmatprep.subr.mxu0 0.0
        %987 = vmatpush1.xpose.msra.mxu0 0.0
        %988 = vmatprep.subr.mxu0 0.0
        %989 = vmatpush1.xpose.msra.mxu0 0.0
        %990 = vmatprep.subr.mxu0 0.0
        %991 = vmatpush1.xpose.msra.mxu0 0.0
        %992 = vmatprep.subr.mxu0 0.0
        %993 = vmatpush1.xpose.msra.mxu0 0.0
        %994 = vmatprep.subr.mxu0 0.0
        %995 = vmatpush1.xpose.msra.mxu0 0.0
        %996 = vmatprep.subr.mxu0 0.0
        %997 = vmatpush1.xpose.msra.mxu0 0.0
        %998 = vmatprep.subr.mxu0 0.0
        %999 = vmatpush1.xpose.msra.mxu0 0.0
        %1000 = vmatprep.subr.mxu0 0.0
        %1001 = vmatpush1.xpose.msra.mxu0 0.0
        %1002 = vmatprep.subr.mxu0 0.0
        %1003 = vmatpush1.xpose.msra.mxu0 0.0
        %1004 = vmatprep.subr.mxu0 0.0
        %1005 = vmatpush1.xpose.msra.mxu0 0.0
        %1006 = vmatprep.subr.mxu0 0.0
        %1007 = vmatpush1.xpose.msra.mxu0 0.0
        %1008 = vmatprep.subr.mxu0 0.0
        %1009 = vmatpush1.xpose.msra.mxu0 0.0
        %1010 = vmatprep.subr.mxu0 0.0
        %1011 = vmatpush1.xpose.msra.mxu0 0.0
        %1012 = vmatprep.subr.mxu0 0.0
        %1013 = vmatpush1.xpose.msra.mxu0 %v982
        %1014 = vmatprep.subr.mxu0 0.0
        %1015 = vmatpush1.xpose.msra.mxu0 %v980
        %1016 = vmatprep.subr.mxu0 0.0
        %1017 = vmatpush2.xpose.msra.mxu0 0.0
        %1018 = vmatprep.subr.mxu0 0.0
        %1019 = vmatpush2.xpose.msra.mxu0 0.0
        %1020 = vmatprep.subr.mxu0 0.0
        %1021 = vmatpush2.xpose.msra.mxu0 0.0
        %1022 = vmatprep.subr.mxu0 0.0
        %1023 = vmatpush2.xpose.msra.mxu0 0.0
        %1024 = vmatprep.subr.mxu0 0.0
        %1025 = vmatpush2.xpose.msra.mxu0 0.0
        %1026 = vmatprep.subr.mxu0 0.0
        %1027 = vmatpush2.xpose.msra.mxu0 0.0
        %1028 = vmatprep.subr.mxu0 0.0
        %1029 = vmatpush2.xpose.msra.mxu0 0.0
        %1030 = vmatprep.subr.mxu0 0.0
        %1031 = vmatpush2.xpose.msra.mxu0 0.0
        %1032 = vmatprep.subr.mxu0 0.0
        %1033 = vmatpush2.xpose.msra.mxu0 0.0
        %1034 = vmatprep.subr.mxu0 0.0
        %1035 = vmatpush2.xpose.msra.mxu0 0.0
        %1036 = vmatprep.subr.mxu0 0.0
        %1037 = vmatpush2.xpose.msra.mxu0 0.0
        %1038 = vmatprep.subr.mxu0 0.0
        %1039 = vmatpush2.xpose.msra.mxu0 0.0
        %1040 = vmatprep.subr.mxu0 0.0
        %1041 = vmatpush2.xpose.msra.mxu0 0.0
        %1042 = vmatprep.subr.mxu0 0.0
        %1043 = vmatpush2.xpose.msra.mxu0 0.0
        %1044 = vmatprep.subr.mxu0 0.0
        %1045 = vmatpush2.xpose.msra.mxu0 0.0
        %1046 = vmatprep.subr.mxu0 0.0
        %1047 = vmatpush2.xpose.msra.mxu0 0.0
        %1048 = vmatprep.mubr.f32.mxu0 0.0
        %1049 = vmatmul.mubr.f32.gmra.mxu0 %v978
        %v1050 = vpop.f32.mrf.mxu0
        %v1051 = vadd.f32 0.0, %v1050
        %v1052 = vpop.f32.mrf.mxu0
        %1053 = vdwg.mxu0
        %v1054 = vmul.f32 %v969, 0.35355338
        %v1055 = vmul.f32 %v1051, 0.35355338
        %v1056 = vsel %vm681, %v1054, -inf
        %v1057 = vrot.slane %v1056, 4
        %v1058 = vmax.f32 %v1056, %v1057
        %v1059 = vrot.slane %v1058, 2
        %v1060 = vmax.f32 %v1058, %v1059
        %v1061 = vrot.slane %v1060, 1
        %v1062 = vmax.f32 %v1060, %v1061
        %v1063 = vsel %vm681, %v1055, -inf
        %v1064 = vrot.slane %v1063, 4
        %v1065 = vmax.f32 %v1063, %v1064
        %v1066 = vrot.slane %v1065, 2
        %v1067 = vmax.f32 %v1065, %v1066
        %v1068 = vrot.slane %v1067, 1
        %v1069 = vmax.f32 %v1067, %v1068
        %v1070 = vsub.f32 %v1054, %v1062
        %v1071 = vsub.f32 %v1055, %v1069
        %v1072 = vmul.f32 %v1070, 1.442695
        %v1073 = vpow.pop %v1072
        %v1074 = vmul.f32 %v1071, 1.442695
        %v1075 = vpow.pop %v1074
        %v1076 = vsel %vm681, %v1073, 0.0
        %v1077 = vrot.slane %v1076, 4
        %v1078 = vadd.f32 %v1076, %v1077
        %v1079 = vrot.slane %v1078, 2
        %v1080 = vadd.f32 %v1078, %v1079
        %v1081 = vrot.slane %v1080, 1
        %v1082 = vadd.f32 %v1080, %v1081
        %v1083 = vsel %vm681, %v1075, 0.0
        %v1084 = vrot.slane %v1083, 4
        %v1085 = vadd.f32 %v1083, %v1084
        %v1086 = vrot.slane %v1085, 2
        %v1087 = vadd.f32 %v1085, %v1086
        %v1088 = vrot.slane %v1087, 1
        %v1089 = vadd.f32 %v1087, %v1088
        %v1090 = vrcp.pop %v1082
        %v1091 = vrcp.pop %v1089
        %v1092 = vmul.f32 %v1073, %v1090
        %v1093 = vmul.f32 %v1075, %v1091
        %v1094 = vsel %vm681, %v1092, 0.0
        %1095 = vadd.xlane.f32.xlu0 %v1094
        %v1096 = vpop.xlane.xlu0 %1095
        %v1097 = vsel %vm681, %v1093, 0.0
        %1098 = vadd.xlane.f32.xlu0 %v1097
        %v1099 = vpop.xlane.xlu0 %1098
        %v1100 = vadd.f32 %v1096, 0.001
        %v1101 = vadd.f32 %v1099, 0.001
        %1102 = vrot.lane.b32.xlu0 %v502, 104
        %v1103 = vpop.permute.xlu0 %1102
        %1104 = vrot.lane.b32.xlu0 %v507, 104
        %v1105 = vpop.permute.xlu0 %1104
        %v1109 = vsel %vm681, %v1092, 0
        %1111 = vmatprep.subr.mxu0 0.0
        %1112 = vmatpush1.msra.mxu0 0.0
        %1113 = vmatprep.subr.mxu0 0.0
        %1114 = vmatpush1.msra.mxu0 0.0
        %1115 = vmatprep.subr.mxu0 0.0
        %1116 = vmatpush1.msra.mxu0 0.0
        %1117 = vmatprep.subr.mxu0 0.0
        %1118 = vmatpush1.msra.mxu0 0.0
        %1119 = vmatprep.subr.mxu0 0.0
        %1120 = vmatpush1.msra.mxu0 0.0
        %1121 = vmatprep.subr.mxu0 0.0
        %1122 = vmatpush1.msra.mxu0 0.0
        %1123 = vmatprep.subr.mxu0 0.0
        %1124 = vmatpush1.msra.mxu0 0.0
        %1125 = vmatprep.subr.mxu0 0.0
        %1126 = vmatpush1.msra.mxu0 0.0
        %1127 = vmatprep.subr.mxu0 0.0
        %1128 = vmatpush1.msra.mxu0 0.0
        %1129 = vmatprep.subr.mxu0 0.0
        %1130 = vmatpush1.msra.mxu0 0.0
        %1131 = vmatprep.subr.mxu0 0.0
        %1132 = vmatpush1.msra.mxu0 0.0
        %1133 = vmatprep.subr.mxu0 0.0
        %1134 = vmatpush1.msra.mxu0 0.0
        %1135 = vmatprep.subr.mxu0 0.0
        %1136 = vmatpush1.msra.mxu0 0.0
        %1137 = vmatprep.subr.mxu0 0.0
        %1138 = vmatpush1.msra.mxu0 0.0
        %1139 = vmatprep.subr.mxu0 0.0
        %1140 = vmatpush1.msra.mxu0 %v1105
        %1141 = vmatprep.subr.mxu0 0.0
        %1142 = vmatpush1.msra.mxu0 %v1103
        %1143 = vmatprep.subr.mxu0 0.0
        %1144 = vmatpush2.msra.mxu0 0.0
        %1145 = vmatprep.subr.mxu0 0.0
        %1146 = vmatpush2.msra.mxu0 0.0
        %1147 = vmatprep.subr.mxu0 0.0
        %1148 = vmatpush2.msra.mxu0 0.0
        %1149 = vmatprep.subr.mxu0 0.0
        %1150 = vmatpush2.msra.mxu0 0.0
        %1151 = vmatprep.subr.mxu0 0.0
        %1152 = vmatpush2.msra.mxu0 0.0
        %1153 = vmatprep.subr.mxu0 0.0
        %1154 = vmatpush2.msra.mxu0 0.0
        %1155 = vmatprep.subr.mxu0 0.0
        %1156 = vmatpush2.msra.mxu0 0.0
        %1157 = vmatprep.subr.mxu0 0.0
        %1158 = vmatpush2.msra.mxu0 0.0
        %1159 = vmatprep.subr.mxu0 0.0
        %1160 = vmatpush2.msra.mxu0 0.0
        %1161 = vmatprep.subr.mxu0 0.0
        %1162 = vmatpush2.msra.mxu0 0.0
        %1163 = vmatprep.subr.mxu0 0.0
        %1164 = vmatpush2.msra.mxu0 0.0
        %1165 = vmatprep.subr.mxu0 0.0
        %1166 = vmatpush2.msra.mxu0 0.0
        %1167 = vmatprep.subr.mxu0 0.0
        %1168 = vmatpush2.msra.mxu0 0.0
        %1169 = vmatprep.subr.mxu0 0.0
        %1170 = vmatpush2.msra.mxu0 0.0
        %1171 = vmatprep.subr.mxu0 0.0
        %1172 = vmatpush2.msra.mxu0 0.0
        %1173 = vmatprep.subr.mxu0 0.0
        %1174 = vmatpush2.msra.mxu0 0.0
        %1175 = vmatprep.mubr.f32.mxu0 0.0
        %1176 = vmatmul.mubr.f32.gmra.mxu0 %v1109
        %v1177 = vpop.f32.mrf.mxu0
        %v1178 = vadd.f32 0.0, %v1177
        %v1179 = vpop.f32.mrf.mxu0
        %1180 = vdwg.mxu0
        %1181 = vrot.lane.b32.xlu0 %v512, 104
        %v1182 = vpop.permute.xlu0 %1181
        %1183 = vrot.lane.b32.xlu0 %v517, 104
        %v1184 = vpop.permute.xlu0 %1183
        %v1188 = vsel %vm681, %v1093, 0
        %1190 = vmatprep.subr.mxu0 0.0
        %1191 = vmatpush1.msra.mxu0 0.0
        %1192 = vmatprep.subr.mxu0 0.0
        %1193 = vmatpush1.msra.mxu0 0.0
        %1194 = vmatprep.subr.mxu0 0.0
        %1195 = vmatpush1.msra.mxu0 0.0
        %1196 = vmatprep.subr.mxu0 0.0
        %1197 = vmatpush1.msra.mxu0 0.0
        %1198 = vmatprep.subr.mxu0 0.0
        %1199 = vmatpush1.msra.mxu0 0.0
        %1200 = vmatprep.subr.mxu0 0.0
        %1201 = vmatpush1.msra.mxu0 0.0
        %1202 = vmatprep.subr.mxu0 0.0
        %1203 = vmatpush1.msra.mxu0 0.0
        %1204 = vmatprep.subr.mxu0 0.0
        %1205 = vmatpush1.msra.mxu0 0.0
        %1206 = vmatprep.subr.mxu0 0.0
        %1207 = vmatpush1.msra.mxu0 0.0
        %1208 = vmatprep.subr.mxu0 0.0
        %1209 = vmatpush1.msra.mxu0 0.0
        %1210 = vmatprep.subr.mxu0 0.0
        %1211 = vmatpush1.msra.mxu0 0.0
        %1212 = vmatprep.subr.mxu0 0.0
        %1213 = vmatpush1.msra.mxu0 0.0
        %1214 = vmatprep.subr.mxu0 0.0
        %1215 = vmatpush1.msra.mxu0 0.0
        %1216 = vmatprep.subr.mxu0 0.0
        %1217 = vmatpush1.msra.mxu0 0.0
        %1218 = vmatprep.subr.mxu0 0.0
        %1219 = vmatpush1.msra.mxu0 %v1184
        %1220 = vmatprep.subr.mxu0 0.0
        %1221 = vmatpush1.msra.mxu0 %v1182
        %1222 = vmatprep.subr.mxu0 0.0
        %1223 = vmatpush2.msra.mxu0 0.0
        %1224 = vmatprep.subr.mxu0 0.0
        %1225 = vmatpush2.msra.mxu0 0.0
        %1226 = vmatprep.subr.mxu0 0.0
        %1227 = vmatpush2.msra.mxu0 0.0
        %1228 = vmatprep.subr.mxu0 0.0
        %1229 = vmatpush2.msra.mxu0 0.0
        %1230 = vmatprep.subr.mxu0 0.0
        %1231 = vmatpush2.msra.mxu0 0.0
        %1232 = vmatprep.subr.mxu0 0.0
        %1233 = vmatpush2.msra.mxu0 0.0
        %1234 = vmatprep.subr.mxu0 0.0
        %1235 = vmatpush2.msra.mxu0 0.0
        %1236 = vmatprep.subr.mxu0 0.0
        %1237 = vmatpush2.msra.mxu0 0.0
        %1238 = vmatprep.subr.mxu0 0.0
        %1239 = vmatpush2.msra.mxu0 0.0
        %1240 = vmatprep.subr.mxu0 0.0
        %1241 = vmatpush2.msra.mxu0 0.0
        %1242 = vmatprep.subr.mxu0 0.0
        %1243 = vmatpush2.msra.mxu0 0.0
        %1244 = vmatprep.subr.mxu0 0.0
        %1245 = vmatpush2.msra.mxu0 0.0
        %1246 = vmatprep.subr.mxu0 0.0
        %1247 = vmatpush2.msra.mxu0 0.0
        %1248 = vmatprep.subr.mxu0 0.0
        %1249 = vmatpush2.msra.mxu0 0.0
        %1250 = vmatprep.subr.mxu0 0.0
        %1251 = vmatpush2.msra.mxu0 0.0
        %1252 = vmatprep.subr.mxu0 0.0
        %1253 = vmatpush2.msra.mxu0 0.0
        %1254 = vmatprep.mubr.f32.mxu0 0.0
        %1255 = vmatmul.mubr.f32.gmra.mxu0 %v1188
        %v1256 = vpop.f32.mrf.mxu0
        %v1257 = vadd.f32 0.0, %v1256
        %v1258 = vpop.f32.mrf.mxu0
        %1259 = vdwg.mxu0
        %v1260 = vrcp.pop %v1100
        %v1261 = vmul.f32 %v1178, %v1260
        %v1262 = vrcp.pop %v1101
        %v1263 = vmul.f32 %v1257, %v1262
        %1266 = vrot.lane.b32.xlu0 %v1261, 8
        %v1267 = vpop.permute.xlu0 %1266
        %1268 = vrot.lane.b32.xlu0 %v1263, 8
        %v1269 = vpop.permute.xlu0 %1268
        %v1272 = vsel %vm520, %v887, %v1267
        %v1273 = vsel %vm520, %v889, %v1269
        %1274 = vst.msk [vmem:[%s296] sm:$0xff] %vm681, %v1272
        %1275 = vst.msk [vmem:[%s296 + $0x8] sm:$0xff] %vm681, %v1273
        %s1276 = sand.u32 %s175, 1
        %s1277 = scalar_lea.sflag [#allocation4], %s1276
        %s1278 = sand.u32 %s175, 1
        %s1279 = smul.addr %s1278, 16
        %s1280 = scalar_lea.vmem [#allocation5], %s1279
        // Predicated region
        $region49: #{tpu_custom_call.1} parent=43 // pred_check
          %p1281 = pneg %p185
        $region50: #{tpu_custom_call.1} parent=43 // pred_check_branch
          %1283 = sbr.rel (%p1281) target = $region52
        $region51: #{tpu_custom_call.1} parent=43 // pred_region
          %s1285 = ssub.s32 256, 256
          %1286 = vsyncadd %s1277, %s1285
          %s1287 = smul.addr %s21, 2
          %s1288 = smul.addr %s1287, 128
          %s1289 = scalar_lea.hbm %s6, %s1288
          %s1290 = sshll.u32 %s1280, 4
          %s1291 = int_to_ptr.vmem [resolvable:$true] %s1290
          %1296 = dma.vmem_to_hbm [thread:$0]  %s1291, 256, %s1289, %s1277, 128, 128, 8
        $region52: #{tpu_custom_call.1} parent=43 // pred_fallthru
          _
      $region44: #{tpu_custom_call.1} parent=5 // pred_fallthru
        _
      %p1297 = scmp.le.s32.totalorder 2, %s16
      // Predicated region
      $region53: #{tpu_custom_call.1} parent=5 // pred_check
        %p1298 = pneg %p1297
      $region54: #{tpu_custom_call.1} parent=5 // pred_check_branch
        %1300 = sbr.rel (%p1298) target = $region56
      $region55: #{tpu_custom_call.1} parent=5 // pred_region
        %s1301 = ssub.s32 %s16, 2
        // Predicated region
        $region57: #{tpu_custom_call.1} parent=55 // pred_check
          %p1302 = pneg %p191
        $region58: #{tpu_custom_call.1} parent=55 // pred_check_branch
          %1304 = sbr.rel (%p1302) target = $region60
        $region59: #{tpu_custom_call.1} parent=55 // pred_region
          %s1305 = sand.u32 %s176, 1
          %s1306 = scalar_lea.sflag [#allocation4], %s1305
          %s1307 = sand.u32 %s176, 1
          %s1308 = smul.addr %s1307, 16
          %s1309 = scalar_lea.vmem [#allocation5], %s1308
          %1310 = dma.done %s1306, 256
        $region60: #{tpu_custom_call.1} parent=55 // pred_fallthru
          _
      $region56: #{tpu_custom_call.1} parent=5 // pred_fallthru
        _
    $region6: #{tpu_custom_call.1} parent=1 // loop_footer
      %s20 = sadd.s32 1, %s16
    $region7: #{tpu_custom_call.1} parent=1 // loop_footer_branch
      %15 = sbr.rel target = $region3
    $region8: #{tpu_custom_call.1} parent=1 // loop_exit
      _
    %1311 = vsyncpa [#allocation3], 1
    %s1312 = scalar_lea.sflag [#allocation3], 1
    %1313 = vsyncpa %s1312, 1
    %1314 = vsyncpa [#allocation4], 1
    %s1315 = scalar_lea.sflag [#allocation4], 1
    %1316 = vsyncpa %s1315, 1

</llo_original>
